<compile_context>
chip_gen: v6e
topology: v6e:2x2x1
jax: 0.10.0
libtpu: 0.0.40
codegen_flags: <defaults>
</compile_context>

<pallas_src>
import math
import functools

import jax
import jax.numpy as jnp
from jax import lax
from jax.experimental import pallas as pl
from jax.experimental.pallas import tpu as pltpu

EPS = 1e-5
NEG_INF = -1.0e9


# ----------------------------- fused Pallas kernel -----------------------------

def _mhsa_kernel(x_ref, gamma_ref, beta_ref, wqkv_ref, bqkv_ref, p_ref,
                 u_ref, vb_ref, mask_ref, wo_ref, bo_ref, out_ref,
                 *, T, D, H, inv_sqrt_dim, mxu_dtype):
    """LN + QKV proj + rel-pos scores + shift + mask + softmax + attn@V + out-proj.

    One batch element per grid step; everything stays in VMEM.
    """
    Dh = D // H

    # ---- pre-LayerNorm + fused QKV projection (f32 LN, mxu_dtype matmul) ----
    x = x_ref[0]                                                 # (T, D) f32
    mean = jnp.mean(x, axis=-1, keepdims=True)
    var = jnp.mean(jnp.square(x - mean), axis=-1, keepdims=True)
    xln = (x - mean) * lax.rsqrt(var + EPS) * gamma_ref[0] + beta_ref[0]
    qkv = jnp.dot(xln.astype(mxu_dtype), wqkv_ref[...],
                  preferred_element_type=jnp.float32) + bqkv_ref[0]   # (T, 3D) f32

    q = qkv[:, :D]                                               # (T, D) f32
    k = qkv[:, D:2 * D].astype(mxu_dtype)                        # (T, D)
    v = qkv[:, 2 * D:3 * D].astype(mxu_dtype)                    # (T, D)
    p = p_ref[...]                                               # (T, D) mxu_dtype

    # hoisted out of the head loop: bias adds + key-mask compare (done once)
    q_u = (q + u_ref[...]).astype(mxu_dtype)                     # (T, D)
    q_v = (q + vb_ref[...]).astype(mxu_dtype)                    # (T, D)
    key_masked = mask_ref[0] != 0                                # (1, T) bool

    # contract last dims of both operands -> (T, T); no .T materialization
    dn = (((1,), (1,)), ((), ()))

    # ---- positional scores for ALL heads, stacked along sublanes: (H*T, T) ----
    pos_list = [
        lax.dot_general(q_v[:, h * Dh:(h + 1) * Dh], p[:, h * Dh:(h + 1) * Dh], dn,
                        preferred_element_type=jnp.float32)
        for h in range(H)
    ]
    s_all = jnp.concatenate(pos_list, axis=0)                    # (H*T, T) f32

    # ---- Transformer-XL relative shift, ONE barrel-shift pass for all heads ----
    #   shifted[r,c] = s[r, T-1-r+c]  for c <= r
    #                = 0              for c == r+1
    #                = s[r+1, c-r-2]  for c >= r+2     (r = row within the head block)
    r_within = lax.broadcasted_iota(jnp.int32, (H * T, 1), 0) % T
    shifts = (r_within + 1) % T                                  # per-row lane shift
    b1 = s_all
    for bit in range((T - 1).bit_length()):
        kk = 1 << bit
        rolled = jnp.roll(b1, kk, axis=1)
        b1 = jnp.where(((shifts >> bit) & 1) == 1, rolled, b1)
    # b1[r,c] = s[r, (c - r - 1) mod T]
    b2 = jnp.roll(b1, -1, axis=0)     # cross-head wrap rows are masked out below
    c_idx = lax.broadcasted_iota(jnp.int32, (H * T, T), 1)
    shifted_all = jnp.where(c_idx <= r_within, b1,
                            jnp.where(c_idx == r_within + 1, 0.0, b2))  # (H*T, T)

    # ---- per-head content scores + softmax + attn@V ----
    ctx_parts = []
    for h in range(H):                                           # static unrolled loop
        lo = h * Dh
        hi = (h + 1) * Dh
        content = lax.dot_general(q_u[:, lo:hi], k[:, lo:hi], dn,
                                  preferred_element_type=jnp.float32)    # (T, T)
        score = (content + shifted_all[h * T:(h + 1) * T, :]) * inv_sqrt_dim
        score = jnp.where(key_masked, NEG_INF, score)
        score = score - jnp.max(score, axis=-1, keepdims=True)
        e = jnp.exp(score)
        attn = e * pl.reciprocal(jnp.sum(e, axis=-1, keepdims=True), approx=True)
        ctx_parts.append(jnp.dot(attn.astype(mxu_dtype), v[:, lo:hi],
                                 preferred_element_type=jnp.float32))    # (T, Dh)

    # ---- single K=D output projection after the head loop ----
    ctx = jnp.concatenate(ctx_parts, axis=1)                     # (T, D) f32
    out = jnp.dot(ctx.astype(mxu_dtype), wo_ref[...],
                  preferred_element_type=jnp.float32) + bo_ref[...]
    out_ref[0] = out


# ----------------------------- wrapper -----------------------------

def mhsa_forward(x, mask, params, num_heads, mxu_dtype=jnp.float32):
    """x: (B, T, D) f32, mask: (B, 1, T) bool (True = masked key position)."""
    B, T, D = x.shape
    H = num_heads
    Dh = D // H
    inv_sqrt_dim = 1.0 / math.sqrt(D)

    gamma = params['ln_gamma'][None, :]
    beta = params['ln_beta'][None, :]
    # Fused QKV weights: one (T,D)x(D,3D) matmul per batch element.
    w_qkv = jnp.concatenate([params['wq'].T, params['wk'].T, params['wv'].T],
                            axis=1).astype(mxu_dtype)
    b_qkv = jnp.concatenate([params['bq'], params['bk'], params['bv']])[None, :]
    woT = params['wo'].T.astype(mxu_dtype)
    bo = params['bo'][None, :]
    u_flat = params['u_bias'].reshape(1, D)           # head-major flatten, matches slices
    v_flat = params['v_bias'].reshape(1, D)

    # Batch-invariant positional projection, hoisted out of the per-batch grid.
    p = jnp.dot(params['pos_table'][:T].astype(jnp.float32),
                params['wp'].T).astype(mxu_dtype)     # (T, D)

    mask_i32 = mask.astype(jnp.int32)                 # (B, 1, T), 1 = masked

    itemsize = jnp.dtype(mxu_dtype).itemsize
    cost = pl.CostEstimate(
        flops=B * (2 * T * D * 3 * D          # QKV projection
                   + 4 * H * T * T * Dh       # content + pos scores
                   + 2 * H * T * T * Dh       # attn @ V
                   + 2 * T * D * D),          # output projection
        transcendentals=B * H * T * T,
        bytes_accessed=(4 * B * T * D * 2
                        + itemsize * (D * 3 * D + D * D + T * D)
                        + 4 * (3 * D + 4 * D) + 4 * B * T))

    cparams = pltpu.CompilerParams(
        dimension_semantics=("parallel",),
        vmem_limit_bytes=32 * 1024 * 1024)

    btd = pl.BlockSpec((1, T, D), lambda b: (b, 0, 0))
    row_d = pl.BlockSpec((1, D), lambda b: (0, 0))
    row_3d = pl.BlockSpec((1, 3 * D), lambda b: (0, 0))
    mat_d3d = pl.BlockSpec((D, 3 * D), lambda b: (0, 0))
    mat_dd = pl.BlockSpec((D, D), lambda b: (0, 0))
    mat_td = pl.BlockSpec((T, D), lambda b: (0, 0))
    mask_spec = pl.BlockSpec((1, 1, T), lambda b: (b, 0, 0))

    out = pl.pallas_call(
        functools.partial(_mhsa_kernel, T=T, D=D, H=H,
                          inv_sqrt_dim=inv_sqrt_dim, mxu_dtype=mxu_dtype),
        out_shape=jax.ShapeDtypeStruct((B, T, D), jnp.float32),
        grid=(B,),
        in_specs=[btd, row_d, row_d, mat_d3d, row_3d, mat_td,
                  row_d, row_d, mask_spec, mat_dd, row_d],
        out_specs=btd,
        compiler_params=cparams,
        cost_estimate=cost,
    )(x, gamma, beta, w_qkv, b_qkv, p, u_flat, v_flat, mask_i32, woT, bo)

    # TODO(synk): nn.Dropout layers are identity here (inference semantics).
    return out


# ----------------------------- reference & setup -----------------------------

def sinusoid_table(n_pos, d):
    pos = jnp.arange(n_pos, dtype=jnp.float32)[:, None]
    i = jnp.arange(d)[None, :]
    angle = pos / jnp.power(10000.0, (2.0 * (i // 2)) / d)
    return jnp.where(i % 2 == 0, jnp.sin(angle), jnp.cos(angle)).astype(jnp.float32)


def init_params(key, D, H, max_len):
    ks = jax.random.split(key, 11)
    s = 0.1
    return {
        'ln_gamma': jnp.ones((D,), jnp.float32),
        'ln_beta': jnp.zeros((D,), jnp.float32),
        'wq': s * jax.random.normal(ks[0], (D, D), jnp.float32),
        'bq': s * jax.random.normal(ks[1], (D,), jnp.float32),
        'wk': s * jax.random.normal(ks[2], (D, D), jnp.float32),
        'bk': s * jax.random.normal(ks[3], (D,), jnp.float32),
        'wv': s * jax.random.normal(ks[4], (D, D), jnp.float32),
        'bv': s * jax.random.normal(ks[5], (D,), jnp.float32),
        'wp': s * jax.random.normal(ks[6], (D, D), jnp.float32),
        'u_bias': s * jax.random.normal(ks[7], (H, D // H), jnp.float32),
        'v_bias': s * jax.random.normal(ks[8], (H, D // H), jnp.float32),
        'wo': s * jax.random.normal(ks[9], (D, D), jnp.float32),
        'bo': s * jax.random.normal(ks[10], (D,), jnp.float32),
        'pos_table': sinusoid_table(max_len, D),
    }


def reference_forward(x, mask, params, num_heads):
    B, T, D = x.shape
    H = num_heads
    Dh = D // H
    pos = jnp.broadcast_to(params['pos_table'][None, :T, :], (B, T, D))
    mean = jnp.mean(x, -1, keepdims=True)
    var = jnp.mean((x - mean) ** 2, -1, keepdims=True)
    xln = (x - mean) / jnp.sqrt(var + EPS) * params['ln_gamma'] + params['ln_beta']
    q = xln @ params['wq'].T + params['bq']
    k = xln @ params['wk'].T + params['bk']
    v = xln @ params['wv'].T + params['bv']
    p = pos @ params['wp'].T
    q = q.reshape(B, T, H, Dh)
    k = k.reshape(B, T, H, Dh).transpose(0, 2, 1, 3)
    v = v.reshape(B, T, H, Dh).transpose(0, 2, 1, 3)
    p = p.reshape(B, T, H, Dh)
    content = jnp.einsum('bthd,bhsd->bhts', q + params['u_bias'], k)
    pos_score = jnp.einsum('bthd,bshd->bhts', q + params['v_bias'], p)
    zeros = jnp.zeros((B, H, T, 1), jnp.float32)
    padded = jnp.concatenate([zeros, pos_score], -1).reshape(B, H, T + 1, T)
    pos_score = padded[:, :, 1:, :].reshape(B, H, T, T)
    score = (content + pos_score) / math.sqrt(D)
    score = jnp.where(mask[:, None, :, :], NEG_INF, score)
    attn = jax.nn.softmax(score, -1)
    ctx = jnp.einsum('bhts,bhsd->bthd', attn, v).reshape(B, T, D)
    return ctx @ params['wo'].T + params['bo']


if __name__ == "__main__":
    B, T, D, H = 2, 8, 32, 4
    params = init_params(jax.random.PRNGKey(0), D, H, max_len=16)
    x = jax.random.normal(jax.random.PRNGKey(1), (B, T, D), jnp.float32)
    valid_len = jnp.array([8, 6])
    # key-padding mask: True = masked, shape (B, 1, T)
    mask = jnp.arange(T)[None, None, :] >= valid_len[:, None, None]

    ref = reference_forward(x, mask, params, H)

    # exact-numerics path (f32 MXU operands); tolerance covers approx EUP reciprocal
    out = jax.block_until_ready(mhsa_forward(x, mask, params, H, mxu_dtype=jnp.float32))
    assert out.shape == (B, T, D)
    assert jnp.allclose(out, ref, atol=2e-3, rtol=2e-3), (
        f"f32 max abs err {float(jnp.max(jnp.abs(out - ref)))}")

    # fast path: bf16 MXU operands with f32 accumulation
    out_bf = jax.block_until_ready(mhsa_forward(x, mask, params, H, mxu_dtype=jnp.bfloat16))
    assert jnp.allclose(out_bf, ref, atol=5e-2, rtol=5e-2), (
        f"bf16 max abs err {float(jnp.max(jnp.abs(out_bf - ref)))}")

    # non-power-of-two T exercises the mod-T wraparound paths of the skew
    T2 = 12
    params2 = init_params(jax.random.PRNGKey(2), D, H, max_len=16)
    x2 = jax.random.normal(jax.random.PRNGKey(3), (B, T2, D), jnp.float32)
    mask2 = jnp.arange(T2)[None, None, :] >= jnp.array([12, 9])[:, None, None]
    out2 = jax.block_until_ready(mhsa_forward(x2, mask2, params2, H, mxu_dtype=jnp.float32))
    ref2 = reference_forward(x2, mask2, params2, H)
    assert jnp.allclose(out2, ref2, atol=2e-3, rtol=2e-3), (
        f"T=12 max abs err {float(jnp.max(jnp.abs(out2 - ref2)))}")

    print("KERNEL_OK")
</pallas_src>

<mosaic_0001>
module attributes {stable_mosaic.version = 11 : i64} {
  func.func @_mhsa_kernel(%arg0: i32, %arg1: memref<1x8x32xf32, #tpu.memory_space<vmem>>, %arg2: memref<1x32xf32, #tpu.memory_space<vmem>>, %arg3: memref<1x32xf32, #tpu.memory_space<vmem>>, %arg4: memref<32x96xf32, #tpu.memory_space<vmem>>, %arg5: memref<1x96xf32, #tpu.memory_space<vmem>>, %arg6: memref<8x32xf32, #tpu.memory_space<vmem>>, %arg7: memref<1x32xf32, #tpu.memory_space<vmem>>, %arg8: memref<1x32xf32, #tpu.memory_space<vmem>>, %arg9: memref<1x1x8xi32, #tpu.memory_space<vmem>>, %arg10: memref<32x32xf32, #tpu.memory_space<vmem>>, %arg11: memref<1x32xf32, #tpu.memory_space<vmem>>, %arg12: memref<1x8x32xf32, #tpu.memory_space<vmem>>) attributes {dimension_semantics = [#tpu.dimension_semantics<parallel>], iteration_bounds = array<i64: 2>, scalar_prefetch = 0 : i64, scratch_operands = 0 : i64, tpu.core_type = #tpu.core_type<tc>, window_params = [{transform_indices = @transform_0, window_bounds = array<i64: 1, 8, 32>}, {pipeline_mode = #tpu.pipeline_mode<synchronous>, transform_indices = @transform_1, window_bounds = array<i64: 1, 32>}, {pipeline_mode = #tpu.pipeline_mode<synchronous>, transform_indices = @transform_2, window_bounds = array<i64: 1, 32>}, {pipeline_mode = #tpu.pipeline_mode<synchronous>, transform_indices = @transform_3, window_bounds = array<i64: 32, 96>}, {pipeline_mode = #tpu.pipeline_mode<synchronous>, transform_indices = @transform_4, window_bounds = array<i64: 1, 96>}, {pipeline_mode = #tpu.pipeline_mode<synchronous>, transform_indices = @transform_5, window_bounds = array<i64: 8, 32>}, {pipeline_mode = #tpu.pipeline_mode<synchronous>, transform_indices = @transform_6, window_bounds = array<i64: 1, 32>}, {pipeline_mode = #tpu.pipeline_mode<synchronous>, transform_indices = @transform_7, window_bounds = array<i64: 1, 32>}, {transform_indices = @transform_8, window_bounds = array<i64: 1, 1, 8>}, {pipeline_mode = #tpu.pipeline_mode<synchronous>, transform_indices = @transform_9, window_bounds = array<i64: 32, 32>}, {pipeline_mode = #tpu.pipeline_mode<synchronous>, transform_indices = @transform_10, window_bounds = array<i64: 1, 32>}, {transform_indices = @transform_11, window_bounds = array<i64: 1, 8, 32>}]} {
    %c0 = arith.constant 0 : index
    %c0_0 = arith.constant 0 : index
    %c0_1 = arith.constant 0 : index
    %0 = vector.load %arg1[%c0, %c0_0, %c0_1] : memref<1x8x32xf32, #tpu.memory_space<vmem>>, vector<1x8x32xf32>
    %1 = vector.shape_cast %0 : vector<1x8x32xf32> to vector<8x32xf32>
    %cst = arith.constant dense<0.000000e+00> : vector<8xf32>
    %2 = vector.multi_reduction <add>, %1, %cst [1] : vector<8x32xf32> to vector<8xf32>
    %3 = vector.shape_cast %2 : vector<8xf32> to vector<8x1xf32>
    %cst_2 = arith.constant 3.200000e+01 : f32
    %4 = vector.broadcast %cst_2 : f32 to vector<8x1xf32>
    %5 = arith.divf %3, %4 : vector<8x1xf32>
    %6 = vector.broadcast %5 : vector<8x1xf32> to vector<8x32xf32>
    %7 = arith.subf %1, %6 : vector<8x32xf32>
    %8 = arith.mulf %7, %7 : vector<8x32xf32>
    %cst_3 = arith.constant dense<0.000000e+00> : vector<8xf32>
    %9 = vector.multi_reduction <add>, %8, %cst_3 [1] : vector<8x32xf32> to vector<8xf32>
    %10 = vector.shape_cast %9 : vector<8xf32> to vector<8x1xf32>
    %cst_4 = arith.constant 3.200000e+01 : f32
    %11 = vector.broadcast %cst_4 : f32 to vector<8x1xf32>
    %12 = arith.divf %10, %11 : vector<8x1xf32>
    %13 = vector.broadcast %5 : vector<8x1xf32> to vector<8x32xf32>
    %14 = arith.subf %1, %13 : vector<8x32xf32>
    %cst_5 = arith.constant 9.99999974E-6 : f32
    %15 = vector.broadcast %cst_5 : f32 to vector<8x1xf32>
    %16 = arith.addf %12, %15 : vector<8x1xf32>
    %17 = math.rsqrt %16 : vector<8x1xf32>
    %18 = vector.broadcast %17 : vector<8x1xf32> to vector<8x32xf32>
    %19 = arith.mulf %14, %18 : vector<8x32xf32>
    %c0_6 = arith.constant 0 : index
    %c0_7 = arith.constant 0 : index
    %20 = vector.load %arg2[%c0_6, %c0_7] : memref<1x32xf32, #tpu.memory_space<vmem>>, vector<1x32xf32>
    %21 = vector.shape_cast %20 : vector<1x32xf32> to vector<32xf32>
    %22 = vector.shape_cast %21 : vector<32xf32> to vector<1x32xf32>
    %23 = vector.broadcast %22 : vector<1x32xf32> to vector<8x32xf32>
    %24 = arith.mulf %19, %23 : vector<8x32xf32>
    %c0_8 = arith.constant 0 : index
    %c0_9 = arith.constant 0 : index
    %25 = vector.load %arg3[%c0_8, %c0_9] : memref<1x32xf32, #tpu.memory_space<vmem>>, vector<1x32xf32>
    %26 = vector.shape_cast %25 : vector<1x32xf32> to vector<32xf32>
    %27 = vector.shape_cast %26 : vector<32xf32> to vector<1x32xf32>
    %28 = vector.broadcast %27 : vector<1x32xf32> to vector<8x32xf32>
    %29 = arith.addf %24, %28 : vector<8x32xf32>
    %c0_10 = arith.constant 0 : index
    %c0_11 = arith.constant 0 : index
    %30 = vector.load %arg4[%c0_10, %c0_11] : memref<32x96xf32, #tpu.memory_space<vmem>>, vector<32x96xf32>
    %cst_12 = arith.constant dense<0.000000e+00> : vector<8x96xf32>
    %31 = tpu.matmul %29, %30, %cst_12 {dimension_numbers = #tpu.dot_dimension_numbers<[1], [0], [0], [1], [0, 0, 1, 1], [], []>} : vector<8x32xf32>, vector<32x96xf32>, vector<8x96xf32> -> vector<8x96xf32>
    %c0_13 = arith.constant 0 : index
    %c0_14 = arith.constant 0 : index
    %32 = vector.load %arg5[%c0_13, %c0_14] : memref<1x96xf32, #tpu.memory_space<vmem>>, vector<1x96xf32>
    %33 = vector.shape_cast %32 : vector<1x96xf32> to vector<96xf32>
    %34 = vector.shape_cast %33 : vector<96xf32> to vector<1x96xf32>
    %35 = vector.broadcast %34 : vector<1x96xf32> to vector<8x96xf32>
    %36 = arith.addf %31, %35 : vector<8x96xf32>
    %37 = vector.extract_strided_slice %36 {offsets = [0, 0], sizes = [8, 32], strides = [1, 1]} : vector<8x96xf32> to vector<8x32xf32>
    %38 = vector.extract_strided_slice %36 {offsets = [0, 32], sizes = [8, 32], strides = [1, 1]} : vector<8x96xf32> to vector<8x32xf32>
    %39 = vector.extract_strided_slice %36 {offsets = [0, 64], sizes = [8, 32], strides = [1, 1]} : vector<8x96xf32> to vector<8x32xf32>
    %c0_15 = arith.constant 0 : index
    %c0_16 = arith.constant 0 : index
    %40 = vector.load %arg6[%c0_15, %c0_16] : memref<8x32xf32, #tpu.memory_space<vmem>>, vector<8x32xf32>
    %c0_17 = arith.constant 0 : index
    %c0_18 = arith.constant 0 : index
    %41 = vector.load %arg7[%c0_17, %c0_18] : memref<1x32xf32, #tpu.memory_space<vmem>>, vector<1x32xf32>
    %42 = vector.broadcast %41 : vector<1x32xf32> to vector<8x32xf32>
    %43 = arith.addf %37, %42 : vector<8x32xf32>
    %c0_19 = arith.constant 0 : index
    %c0_20 = arith.constant 0 : index
    %44 = vector.load %arg8[%c0_19, %c0_20] : memref<1x32xf32, #tpu.memory_space<vmem>>, vector<1x32xf32>
    %45 = vector.broadcast %44 : vector<1x32xf32> to vector<8x32xf32>
    %46 = arith.addf %37, %45 : vector<8x32xf32>
    %c0_21 = arith.constant 0 : index
    %c0_22 = arith.constant 0 : index
    %c0_23 = arith.constant 0 : index
    %47 = vector.load %arg9[%c0_21, %c0_22, %c0_23] : memref<1x1x8xi32, #tpu.memory_space<vmem>>, vector<1x1x8xi32>
    %48 = vector.shape_cast %47 : vector<1x1x8xi32> to vector<1x8xi32>
    %c0_i32 = arith.constant 0 : i32
    %49 = vector.broadcast %c0_i32 : i32 to vector<1x8xi32>
    %50 = arith.cmpi ne, %48, %49 : vector<1x8xi32>
    %51 = vector.extract_strided_slice %46 {offsets = [0, 0], sizes = [8, 8], strides = [1, 1]} : vector<8x32xf32> to vector<8x8xf32>
    %52 = vector.extract_strided_slice %40 {offsets = [0, 0], sizes = [8, 8], strides = [1, 1]} : vector<8x32xf32> to vector<8x8xf32>
    %cst_24 = arith.constant dense<0.000000e+00> : vector<8x8xf32>
    %53 = tpu.matmul %51, %52, %cst_24 {dimension_numbers = #tpu.dot_dimension_numbers<[1], [1], [0], [0], [0, 0, 1, 0], [], []>} : vector<8x8xf32>, vector<8x8xf32>, vector<8x8xf32> -> vector<8x8xf32>
    %54 = vector.extract_strided_slice %46 {offsets = [0, 8], sizes = [8, 8], strides = [1, 1]} : vector<8x32xf32> to vector<8x8xf32>
    %55 = vector.extract_strided_slice %40 {offsets = [0, 8], sizes = [8, 8], strides = [1, 1]} : vector<8x32xf32> to vector<8x8xf32>
    %cst_25 = arith.constant dense<0.000000e+00> : vector<8x8xf32>
    %56 = tpu.matmul %54, %55, %cst_25 {dimension_numbers = #tpu.dot_dimension_numbers<[1], [1], [0], [0], [0, 0, 1, 0], [], []>} : vector<8x8xf32>, vector<8x8xf32>, vector<8x8xf32> -> vector<8x8xf32>
    %57 = vector.extract_strided_slice %46 {offsets = [0, 16], sizes = [8, 8], strides = [1, 1]} : vector<8x32xf32> to vector<8x8xf32>
    %58 = vector.extract_strided_slice %40 {offsets = [0, 16], sizes = [8, 8], strides = [1, 1]} : vector<8x32xf32> to vector<8x8xf32>
    %cst_26 = arith.constant dense<0.000000e+00> : vector<8x8xf32>
    %59 = tpu.matmul %57, %58, %cst_26 {dimension_numbers = #tpu.dot_dimension_numbers<[1], [1], [0], [0], [0, 0, 1, 0], [], []>} : vector<8x8xf32>, vector<8x8xf32>, vector<8x8xf32> -> vector<8x8xf32>
    %60 = vector.extract_strided_slice %46 {offsets = [0, 24], sizes = [8, 8], strides = [1, 1]} : vector<8x32xf32> to vector<8x8xf32>
    %61 = vector.extract_strided_slice %40 {offsets = [0, 24], sizes = [8, 8], strides = [1, 1]} : vector<8x32xf32> to vector<8x8xf32>
    %cst_27 = arith.constant dense<0.000000e+00> : vector<8x8xf32>
    %62 = tpu.matmul %60, %61, %cst_27 {dimension_numbers = #tpu.dot_dimension_numbers<[1], [1], [0], [0], [0, 0, 1, 0], [], []>} : vector<8x8xf32>, vector<8x8xf32>, vector<8x8xf32> -> vector<8x8xf32>
    %63 = tpu.concatenate %53, %56, %59, %62 in 0 : vector<8x8xf32>, vector<8x8xf32>, vector<8x8xf32>, vector<8x8xf32> -> vector<32x8xf32>
    %64 = tpu.iota {dimensions = array<i32: 0>} : vector<32x1xi32>
    %c8_i32 = arith.constant 8 : i32
    %c0_i32_28 = arith.constant 0 : i32
    %65 = arith.cmpi eq, %c8_i32, %c0_i32_28 : i32
    %c1_i32 = arith.constant 1 : i32
    %66 = arith.select %65, %c1_i32, %c8_i32 : i32
    %67 = vector.broadcast %66 : i32 to vector<32x1xi32>
    %68 = arith.remsi %64, %67 : vector<32x1xi32>
    %c0_i32_29 = arith.constant 0 : i32
    %69 = vector.broadcast %c0_i32_29 : i32 to vector<32x1xi32>
    %70 = arith.cmpi ne, %68, %69 : vector<32x1xi32>
    %c0_i32_30 = arith.constant 0 : i32
    %71 = vector.broadcast %c0_i32_30 : i32 to vector<32x1xi32>
    %72 = arith.cmpi slt, %68, %71 : vector<32x1xi32>
    %c0_i32_31 = arith.constant 0 : i32
    %73 = arith.cmpi slt, %66, %c0_i32_31 : i32
    %74 = vector.broadcast %73 : i1 to vector<32x1xi1>
    %75 = vector.broadcast %74 : vector<32x1xi1> to vector<32x1xi1>
    %76 = arith.xori %72, %75 : vector<32x1xi1>
    %77 = arith.andi %76, %70 : vector<32x1xi1>
    %78 = vector.broadcast %66 : i32 to vector<32x1xi32>
    %79 = arith.addi %68, %78 : vector<32x1xi32>
    %80 = arith.select %77, %79, %68 : vector<32x1xi1>, vector<32x1xi32>
    %c1_i32_32 = arith.constant 1 : i32
    %81 = vector.broadcast %c1_i32_32 : i32 to vector<32x1xi32>
    %82 = arith.addi %80, %81 : vector<32x1xi32>
    %c8_i32_33 = arith.constant 8 : i32
    %c0_i32_34 = arith.constant 0 : i32
    %83 = arith.cmpi eq, %c8_i32_33, %c0_i32_34 : i32
    %c1_i32_35 = arith.constant 1 : i32
    %84 = arith.select %83, %c1_i32_35, %c8_i32_33 : i32
    %85 = vector.broadcast %84 : i32 to vector<32x1xi32>
    %86 = arith.remsi %82, %85 : vector<32x1xi32>
    %c0_i32_36 = arith.constant 0 : i32
    %87 = vector.broadcast %c0_i32_36 : i32 to vector<32x1xi32>
    %88 = arith.cmpi ne, %86, %87 : vector<32x1xi32>
    %c0_i32_37 = arith.constant 0 : i32
    %89 = vector.broadcast %c0_i32_37 : i32 to vector<32x1xi32>
    %90 = arith.cmpi slt, %86, %89 : vector<32x1xi32>
    %c0_i32_38 = arith.constant 0 : i32
    %91 = arith.cmpi slt, %84, %c0_i32_38 : i32
    %92 = vector.broadcast %91 : i1 to vector<32x1xi1>
    %93 = vector.broadcast %92 : vector<32x1xi1> to vector<32x1xi1>
    %94 = arith.xori %90, %93 : vector<32x1xi1>
    %95 = arith.andi %94, %88 : vector<32x1xi1>
    %96 = vector.broadcast %84 : i32 to vector<32x1xi32>
    %97 = arith.addi %86, %96 : vector<32x1xi32>
    %98 = arith.select %95, %97, %86 : vector<32x1xi1>, vector<32x1xi32>
    %99 = vector.extract_strided_slice %63 {offsets = [0, 7], sizes = [32, 1], strides = [1, 1]} : vector<32x8xf32> to vector<32x1xf32>
    %100 = vector.extract_strided_slice %63 {offsets = [0, 0], sizes = [32, 7], strides = [1, 1]} : vector<32x8xf32> to vector<32x7xf32>
    %101 = tpu.concatenate %99, %100 in 1 : vector<32x1xf32>, vector<32x7xf32> -> vector<32x8xf32>
    %c0_i32_39 = arith.constant 0 : i32
    %102 = vector.broadcast %c0_i32_39 : i32 to vector<32x1xi32>
    %103 = arith.shrsi %98, %102 : vector<32x1xi32>
    %c1_i32_40 = arith.constant 1 : i32
    %104 = vector.broadcast %c1_i32_40 : i32 to vector<32x1xi32>
    %105 = arith.andi %103, %104 : vector<32x1xi32>
    %c1_i32_41 = arith.constant 1 : i32
    %106 = vector.broadcast %c1_i32_41 : i32 to vector<32x1xi32>
    %107 = arith.cmpi eq, %105, %106 : vector<32x1xi32>
    %108 = vector.shape_cast %107 : vector<32x1xi1> to vector<32x1xi1>
    %109 = vector.broadcast %108 : vector<32x1xi1> to vector<32x8xi1>
    %110 = arith.select %109, %101, %63 : vector<32x8xi1>, vector<32x8xf32>
    %111 = vector.extract_strided_slice %110 {offsets = [0, 6], sizes = [32, 2], strides = [1, 1]} : vector<32x8xf32> to vector<32x2xf32>
    %112 = vector.extract_strided_slice %110 {offsets = [0, 0], sizes = [32, 6], strides = [1, 1]} : vector<32x8xf32> to vector<32x6xf32>
    %113 = tpu.concatenate %111, %112 in 1 : vector<32x2xf32>, vector<32x6xf32> -> vector<32x8xf32>
    %c1_i32_42 = arith.constant 1 : i32
    %114 = vector.broadcast %c1_i32_42 : i32 to vector<32x1xi32>
    %115 = arith.shrsi %98, %114 : vector<32x1xi32>
    %c1_i32_43 = arith.constant 1 : i32
    %116 = vector.broadcast %c1_i32_43 : i32 to vector<32x1xi32>
    %117 = arith.andi %115, %116 : vector<32x1xi32>
    %c1_i32_44 = arith.constant 1 : i32
    %118 = vector.broadcast %c1_i32_44 : i32 to vector<32x1xi32>
    %119 = arith.cmpi eq, %117, %118 : vector<32x1xi32>
    %120 = vector.shape_cast %119 : vector<32x1xi1> to vector<32x1xi1>
    %121 = vector.broadcast %120 : vector<32x1xi1> to vector<32x8xi1>
    %122 = arith.select %121, %113, %110 : vector<32x8xi1>, vector<32x8xf32>
    %123 = vector.extract_strided_slice %122 {offsets = [0, 4], sizes = [32, 4], strides = [1, 1]} : vector<32x8xf32> to vector<32x4xf32>
    %124 = vector.extract_strided_slice %122 {offsets = [0, 0], sizes = [32, 4], strides = [1, 1]} : vector<32x8xf32> to vector<32x4xf32>
    %125 = tpu.concatenate %123, %124 in 1 : vector<32x4xf32>, vector<32x4xf32> -> vector<32x8xf32>
    %c2_i32 = arith.constant 2 : i32
    %126 = vector.broadcast %c2_i32 : i32 to vector<32x1xi32>
    %127 = arith.shrsi %98, %126 : vector<32x1xi32>
    %c1_i32_45 = arith.constant 1 : i32
    %128 = vector.broadcast %c1_i32_45 : i32 to vector<32x1xi32>
    %129 = arith.andi %127, %128 : vector<32x1xi32>
    %c1_i32_46 = arith.constant 1 : i32
    %130 = vector.broadcast %c1_i32_46 : i32 to vector<32x1xi32>
    %131 = arith.cmpi eq, %129, %130 : vector<32x1xi32>
    %132 = vector.shape_cast %131 : vector<32x1xi1> to vector<32x1xi1>
    %133 = vector.broadcast %132 : vector<32x1xi1> to vector<32x8xi1>
    %134 = arith.select %133, %125, %122 : vector<32x8xi1>, vector<32x8xf32>
    %135 = vector.extract_strided_slice %134 {offsets = [1, 0], sizes = [31, 8], strides = [1, 1]} : vector<32x8xf32> to vector<31x8xf32>
    %136 = vector.extract_strided_slice %134 {offsets = [0, 0], sizes = [1, 8], strides = [1, 1]} : vector<32x8xf32> to vector<1x8xf32>
    %137 = tpu.concatenate %135, %136 in 0 : vector<31x8xf32>, vector<1x8xf32> -> vector<32x8xf32>
    %138 = tpu.iota {dimensions = array<i32: 1>} : vector<32x8xi32>
    %139 = vector.broadcast %80 : vector<32x1xi32> to vector<32x8xi32>
    %140 = arith.cmpi sle, %138, %139 : vector<32x8xi32>
    %c1_i32_47 = arith.constant 1 : i32
    %141 = vector.broadcast %c1_i32_47 : i32 to vector<32x1xi32>
    %142 = arith.addi %80, %141 : vector<32x1xi32>
    %143 = vector.broadcast %142 : vector<32x1xi32> to vector<32x8xi32>
    %144 = arith.cmpi eq, %138, %143 : vector<32x8xi32>
    %cst_48 = arith.constant 0.000000e+00 : f32
    %145 = vector.broadcast %cst_48 : f32 to vector<32x8xf32>
    %146 = arith.select %144, %145, %137 : vector<32x8xi1>, vector<32x8xf32>
    %147 = arith.select %140, %134, %146 : vector<32x8xi1>, vector<32x8xf32>
    %148 = vector.extract_strided_slice %43 {offsets = [0, 0], sizes = [8, 8], strides = [1, 1]} : vector<8x32xf32> to vector<8x8xf32>
    %149 = vector.extract_strided_slice %38 {offsets = [0, 0], sizes = [8, 8], strides = [1, 1]} : vector<8x32xf32> to vector<8x8xf32>
    %cst_49 = arith.constant dense<0.000000e+00> : vector<8x8xf32>
    %150 = tpu.matmul %148, %149, %cst_49 {dimension_numbers = #tpu.dot_dimension_numbers<[1], [1], [0], [0], [0, 0, 1, 0], [], []>} : vector<8x8xf32>, vector<8x8xf32>, vector<8x8xf32> -> vector<8x8xf32>
    %151 = vector.extract_strided_slice %147 {offsets = [0, 0], sizes = [8, 8], strides = [1, 1]} : vector<32x8xf32> to vector<8x8xf32>
    %152 = arith.addf %150, %151 : vector<8x8xf32>
    %cst_50 = arith.constant 0.176776692 : f32
    %153 = vector.broadcast %cst_50 : f32 to vector<8x8xf32>
    %154 = arith.mulf %152, %153 : vector<8x8xf32>
    %cst_51 = arith.constant -1.000000e+09 : f32
    %155 = vector.shape_cast %50 : vector<1x8xi1> to vector<1x8xi1>
    %156 = vector.broadcast %155 : vector<1x8xi1> to vector<8x8xi1>
    %157 = vector.broadcast %cst_51 : f32 to vector<8x8xf32>
    %158 = arith.select %156, %157, %154 : vector<8x8xi1>, vector<8x8xf32>
    %cst_52 = arith.constant dense<0xFF800000> : vector<8xf32>
    %159 = vector.multi_reduction <maximumf>, %158, %cst_52 [1] : vector<8x8xf32> to vector<8xf32>
    %160 = vector.shape_cast %159 : vector<8xf32> to vector<8x1xf32>
    %161 = vector.broadcast %160 : vector<8x1xf32> to vector<8x8xf32>
    %162 = arith.subf %158, %161 : vector<8x8xf32>
    %163 = math.exp %162 : vector<8x8xf32>
    %cst_53 = arith.constant dense<0.000000e+00> : vector<8xf32>
    %164 = vector.multi_reduction <add>, %163, %cst_53 [1] : vector<8x8xf32> to vector<8xf32>
    %165 = vector.shape_cast %164 : vector<8xf32> to vector<8x1xf32>
    %166 = tpu.reciprocal %165 {approx = true} : vector<8x1xf32> -> vector<8x1xf32>
    %167 = vector.broadcast %166 : vector<8x1xf32> to vector<8x8xf32>
    %168 = arith.mulf %163, %167 : vector<8x8xf32>
    %169 = vector.extract_strided_slice %39 {offsets = [0, 0], sizes = [8, 8], strides = [1, 1]} : vector<8x32xf32> to vector<8x8xf32>
    %cst_54 = arith.constant dense<0.000000e+00> : vector<8x8xf32>
    %170 = tpu.matmul %168, %169, %cst_54 {dimension_numbers = #tpu.dot_dimension_numbers<[1], [0], [0], [1], [0, 0, 1, 1], [], []>} : vector<8x8xf32>, vector<8x8xf32>, vector<8x8xf32> -> vector<8x8xf32>
    %171 = vector.extract_strided_slice %43 {offsets = [0, 8], sizes = [8, 8], strides = [1, 1]} : vector<8x32xf32> to vector<8x8xf32>
    %172 = vector.extract_strided_slice %38 {offsets = [0, 8], sizes = [8, 8], strides = [1, 1]} : vector<8x32xf32> to vector<8x8xf32>
    %cst_55 = arith.constant dense<0.000000e+00> : vector<8x8xf32>
    %173 = tpu.matmul %171, %172, %cst_55 {dimension_numbers = #tpu.dot_dimension_numbers<[1], [1], [0], [0], [0, 0, 1, 0], [], []>} : vector<8x8xf32>, vector<8x8xf32>, vector<8x8xf32> -> vector<8x8xf32>
    %174 = vector.extract_strided_slice %147 {offsets = [8, 0], sizes = [8, 8], strides = [1, 1]} : vector<32x8xf32> to vector<8x8xf32>
    %175 = arith.addf %173, %174 : vector<8x8xf32>
    %cst_56 = arith.constant 0.176776692 : f32
    %176 = vector.broadcast %cst_56 : f32 to vector<8x8xf32>
    %177 = arith.mulf %175, %176 : vector<8x8xf32>
    %cst_57 = arith.constant -1.000000e+09 : f32
    %178 = vector.shape_cast %50 : vector<1x8xi1> to vector<1x8xi1>
    %179 = vector.broadcast %178 : vector<1x8xi1> to vector<8x8xi1>
    %180 = vector.broadcast %cst_57 : f32 to vector<8x8xf32>
    %181 = arith.select %179, %180, %177 : vector<8x8xi1>, vector<8x8xf32>
    %cst_58 = arith.constant dense<0xFF800000> : vector<8xf32>
    %182 = vector.multi_reduction <maximumf>, %181, %cst_58 [1] : vector<8x8xf32> to vector<8xf32>
    %183 = vector.shape_cast %182 : vector<8xf32> to vector<8x1xf32>
    %184 = vector.broadcast %183 : vector<8x1xf32> to vector<8x8xf32>
    %185 = arith.subf %181, %184 : vector<8x8xf32>
    %186 = math.exp %185 : vector<8x8xf32>
    %cst_59 = arith.constant dense<0.000000e+00> : vector<8xf32>
    %187 = vector.multi_reduction <add>, %186, %cst_59 [1] : vector<8x8xf32> to vector<8xf32>
    %188 = vector.shape_cast %187 : vector<8xf32> to vector<8x1xf32>
    %189 = tpu.reciprocal %188 {approx = true} : vector<8x1xf32> -> vector<8x1xf32>
    %190 = vector.broadcast %189 : vector<8x1xf32> to vector<8x8xf32>
    %191 = arith.mulf %186, %190 : vector<8x8xf32>
    %192 = vector.extract_strided_slice %39 {offsets = [0, 8], sizes = [8, 8], strides = [1, 1]} : vector<8x32xf32> to vector<8x8xf32>
    %cst_60 = arith.constant dense<0.000000e+00> : vector<8x8xf32>
    %193 = tpu.matmul %191, %192, %cst_60 {dimension_numbers = #tpu.dot_dimension_numbers<[1], [0], [0], [1], [0, 0, 1, 1], [], []>} : vector<8x8xf32>, vector<8x8xf32>, vector<8x8xf32> -> vector<8x8xf32>
    %194 = vector.extract_strided_slice %43 {offsets = [0, 16], sizes = [8, 8], strides = [1, 1]} : vector<8x32xf32> to vector<8x8xf32>
    %195 = vector.extract_strided_slice %38 {offsets = [0, 16], sizes = [8, 8], strides = [1, 1]} : vector<8x32xf32> to vector<8x8xf32>
    %cst_61 = arith.constant dense<0.000000e+00> : vector<8x8xf32>
    %196 = tpu.matmul %194, %195, %cst_61 {dimension_numbers = #tpu.dot_dimension_numbers<[1], [1], [0], [0], [0, 0, 1, 0], [], []>} : vector<8x8xf32>, vector<8x8xf32>, vector<8x8xf32> -> vector<8x8xf32>
    %197 = vector.extract_strided_slice %147 {offsets = [16, 0], sizes = [8, 8], strides = [1, 1]} : vector<32x8xf32> to vector<8x8xf32>
    %198 = arith.addf %196, %197 : vector<8x8xf32>
    %cst_62 = arith.constant 0.176776692 : f32
    %199 = vector.broadcast %cst_62 : f32 to vector<8x8xf32>
    %200 = arith.mulf %198, %199 : vector<8x8xf32>
    %cst_63 = arith.constant -1.000000e+09 : f32
    %201 = vector.shape_cast %50 : vector<1x8xi1> to vector<1x8xi1>
    %202 = vector.broadcast %201 : vector<1x8xi1> to vector<8x8xi1>
    %203 = vector.broadcast %cst_63 : f32 to vector<8x8xf32>
    %204 = arith.select %202, %203, %200 : vector<8x8xi1>, vector<8x8xf32>
    %cst_64 = arith.constant dense<0xFF800000> : vector<8xf32>
    %205 = vector.multi_reduction <maximumf>, %204, %cst_64 [1] : vector<8x8xf32> to vector<8xf32>
    %206 = vector.shape_cast %205 : vector<8xf32> to vector<8x1xf32>
    %207 = vector.broadcast %206 : vector<8x1xf32> to vector<8x8xf32>
    %208 = arith.subf %204, %207 : vector<8x8xf32>
    %209 = math.exp %208 : vector<8x8xf32>
    %cst_65 = arith.constant dense<0.000000e+00> : vector<8xf32>
    %210 = vector.multi_reduction <add>, %209, %cst_65 [1] : vector<8x8xf32> to vector<8xf32>
    %211 = vector.shape_cast %210 : vector<8xf32> to vector<8x1xf32>
    %212 = tpu.reciprocal %211 {approx = true} : vector<8x1xf32> -> vector<8x1xf32>
    %213 = vector.broadcast %212 : vector<8x1xf32> to vector<8x8xf32>
    %214 = arith.mulf %209, %213 : vector<8x8xf32>
    %215 = vector.extract_strided_slice %39 {offsets = [0, 16], sizes = [8, 8], strides = [1, 1]} : vector<8x32xf32> to vector<8x8xf32>
    %cst_66 = arith.constant dense<0.000000e+00> : vector<8x8xf32>
    %216 = tpu.matmul %214, %215, %cst_66 {dimension_numbers = #tpu.dot_dimension_numbers<[1], [0], [0], [1], [0, 0, 1, 1], [], []>} : vector<8x8xf32>, vector<8x8xf32>, vector<8x8xf32> -> vector<8x8xf32>
    %217 = vector.extract_strided_slice %43 {offsets = [0, 24], sizes = [8, 8], strides = [1, 1]} : vector<8x32xf32> to vector<8x8xf32>
    %218 = vector.extract_strided_slice %38 {offsets = [0, 24], sizes = [8, 8], strides = [1, 1]} : vector<8x32xf32> to vector<8x8xf32>
    %cst_67 = arith.constant dense<0.000000e+00> : vector<8x8xf32>
    %219 = tpu.matmul %217, %218, %cst_67 {dimension_numbers = #tpu.dot_dimension_numbers<[1], [1], [0], [0], [0, 0, 1, 0], [], []>} : vector<8x8xf32>, vector<8x8xf32>, vector<8x8xf32> -> vector<8x8xf32>
    %220 = vector.extract_strided_slice %147 {offsets = [24, 0], sizes = [8, 8], strides = [1, 1]} : vector<32x8xf32> to vector<8x8xf32>
    %221 = arith.addf %219, %220 : vector<8x8xf32>
    %cst_68 = arith.constant 0.176776692 : f32
    %222 = vector.broadcast %cst_68 : f32 to vector<8x8xf32>
    %223 = arith.mulf %221, %222 : vector<8x8xf32>
    %cst_69 = arith.constant -1.000000e+09 : f32
    %224 = vector.shape_cast %50 : vector<1x8xi1> to vector<1x8xi1>
    %225 = vector.broadcast %224 : vector<1x8xi1> to vector<8x8xi1>
    %226 = vector.broadcast %cst_69 : f32 to vector<8x8xf32>
    %227 = arith.select %225, %226, %223 : vector<8x8xi1>, vector<8x8xf32>
    %cst_70 = arith.constant dense<0xFF800000> : vector<8xf32>
    %228 = vector.multi_reduction <maximumf>, %227, %cst_70 [1] : vector<8x8xf32> to vector<8xf32>
    %229 = vector.shape_cast %228 : vector<8xf32> to vector<8x1xf32>
    %230 = vector.broadcast %229 : vector<8x1xf32> to vector<8x8xf32>
    %231 = arith.subf %227, %230 : vector<8x8xf32>
    %232 = math.exp %231 : vector<8x8xf32>
    %cst_71 = arith.constant dense<0.000000e+00> : vector<8xf32>
    %233 = vector.multi_reduction <add>, %232, %cst_71 [1] : vector<8x8xf32> to vector<8xf32>
    %234 = vector.shape_cast %233 : vector<8xf32> to vector<8x1xf32>
    %235 = tpu.reciprocal %234 {approx = true} : vector<8x1xf32> -> vector<8x1xf32>
    %236 = vector.broadcast %235 : vector<8x1xf32> to vector<8x8xf32>
    %237 = arith.mulf %232, %236 : vector<8x8xf32>
    %238 = vector.extract_strided_slice %39 {offsets = [0, 24], sizes = [8, 8], strides = [1, 1]} : vector<8x32xf32> to vector<8x8xf32>
    %cst_72 = arith.constant dense<0.000000e+00> : vector<8x8xf32>
    %239 = tpu.matmul %237, %238, %cst_72 {dimension_numbers = #tpu.dot_dimension_numbers<[1], [0], [0], [1], [0, 0, 1, 1], [], []>} : vector<8x8xf32>, vector<8x8xf32>, vector<8x8xf32> -> vector<8x8xf32>
    %240 = tpu.concatenate %170, %193, %216, %239 in 1 : vector<8x8xf32>, vector<8x8xf32>, vector<8x8xf32>, vector<8x8xf32> -> vector<8x32xf32>
    %c0_73 = arith.constant 0 : index
    %c0_74 = arith.constant 0 : index
    %241 = vector.load %arg10[%c0_73, %c0_74] : memref<32x32xf32, #tpu.memory_space<vmem>>, vector<32x32xf32>
    %cst_75 = arith.constant dense<0.000000e+00> : vector<8x32xf32>
    %242 = tpu.matmul %240, %241, %cst_75 {dimension_numbers = #tpu.dot_dimension_numbers<[1], [0], [0], [1], [0, 0, 1, 1], [], []>} : vector<8x32xf32>, vector<32x32xf32>, vector<8x32xf32> -> vector<8x32xf32>
    %c0_76 = arith.constant 0 : index
    %c0_77 = arith.constant 0 : index
    %243 = vector.load %arg11[%c0_76, %c0_77] : memref<1x32xf32, #tpu.memory_space<vmem>>, vector<1x32xf32>
    %244 = vector.broadcast %243 : vector<1x32xf32> to vector<8x32xf32>
    %245 = arith.addf %242, %244 : vector<8x32xf32>
    %c0_78 = arith.constant 0 : index
    %c0_79 = arith.constant 0 : index
    %c0_80 = arith.constant 0 : index
    %246 = vector.load %arg12[%c0_78, %c0_79, %c0_80] : memref<1x8x32xf32, #tpu.memory_space<vmem>>, vector<1x8x32xf32>
    %247 = vector.shape_cast %246 : vector<1x8x32xf32> to vector<8x32xf32>
    %248 = vector.shape_cast %245 : vector<8x32xf32> to vector<1x8x32xf32>
    tpu.vector_store %arg12[%c0_78, %c0_79, %c0_80], %248 {strides = array<i32>} : memref<1x8x32xf32, #tpu.memory_space<vmem>>, vector<1x8x32xf32>,
    return
  }
  func.func @transform_0(%arg0: i32) -> (i32, i32, i32) {
    %c0_i32 = arith.constant 0 : i32
    %c0_i32_0 = arith.constant 0 : i32
    %c0_i32_1 = arith.constant 0 : i32
    return %arg0, %c0_i32, %c0_i32_0 : i32, i32, i32
  }
  func.func @transform_1(%arg0: i32) -> (i32, i32) {
    %c0_i32 = arith.constant 0 : i32
    %c0_i32_0 = arith.constant 0 : i32
    %c0_i32_1 = arith.constant 0 : i32
    return %c0_i32, %c0_i32_0 : i32, i32
  }
  func.func @transform_2(%arg0: i32) -> (i32, i32) {
    %c0_i32 = arith.constant 0 : i32
    %c0_i32_0 = arith.constant 0 : i32
    %c0_i32_1 = arith.constant 0 : i32
    return %c0_i32, %c0_i32_0 : i32, i32
  }
  func.func @transform_3(%arg0: i32) -> (i32, i32) {
    %c0_i32 = arith.constant 0 : i32
    %c0_i32_0 = arith.constant 0 : i32
    %c0_i32_1 = arith.constant 0 : i32
    return %c0_i32, %c0_i32_0 : i32, i32
  }
  func.func @transform_4(%arg0: i32) -> (i32, i32) {
    %c0_i32 = arith.constant 0 : i32
    %c0_i32_0 = arith.constant 0 : i32
    %c0_i32_1 = arith.constant 0 : i32
    return %c0_i32, %c0_i32_0 : i32, i32
  }
  func.func @transform_5(%arg0: i32) -> (i32, i32) {
    %c0_i32 = arith.constant 0 : i32
    %c0_i32_0 = arith.constant 0 : i32
    %c0_i32_1 = arith.constant 0 : i32
    return %c0_i32, %c0_i32_0 : i32, i32
  }
  func.func @transform_6(%arg0: i32) -> (i32, i32) {
    %c0_i32 = arith.constant 0 : i32
    %c0_i32_0 = arith.constant 0 : i32
    %c0_i32_1 = arith.constant 0 : i32
    return %c0_i32, %c0_i32_0 : i32, i32
  }
  func.func @transform_7(%arg0: i32) -> (i32, i32) {
    %c0_i32 = arith.constant 0 : i32
    %c0_i32_0 = arith.constant 0 : i32
    %c0_i32_1 = arith.constant 0 : i32
    return %c0_i32, %c0_i32_0 : i32, i32
  }
  func.func @transform_8(%arg0: i32) -> (i32, i32, i32) {
    %c0_i32 = arith.constant 0 : i32
    %c0_i32_0 = arith.constant 0 : i32
    %c0_i32_1 = arith.constant 0 : i32
    return %arg0, %c0_i32, %c0_i32_0 : i32, i32, i32
  }
  func.func @transform_9(%arg0: i32) -> (i32, i32) {
    %c0_i32 = arith.constant 0 : i32
    %c0_i32_0 = arith.constant 0 : i32
    %c0_i32_1 = arith.constant 0 : i32
    return %c0_i32, %c0_i32_0 : i32, i32
  }
  func.func @transform_10(%arg0: i32) -> (i32, i32) {
    %c0_i32 = arith.constant 0 : i32
    %c0_i32_0 = arith.constant 0 : i32
    %c0_i32_1 = arith.constant 0 : i32
    return %c0_i32, %c0_i32_0 : i32, i32
  }
  func.func @transform_11(%arg0: i32) -> (i32, i32, i32) {
    %c0_i32 = arith.constant 0 : i32
    %c0_i32_0 = arith.constant 0 : i32
    %c0_i32_1 = arith.constant 0 : i32
    return %arg0, %c0_i32, %c0_i32_0 : i32, i32, i32
  }
}

</mosaic_0001>

<llo_original>
// kernel: tpu_custom_call.1
$region0: #{tpu_custom_call.1}
  #allocation0 [shape = 'u32[]', space=smem, size = 0x4, offset = 0x4, fixed_abs, tag = 'smem constant byte address 0x4 - core index']
  #allocation1 [shape = 'u32[144,128]{1,0:T(1,128)}', space=vmem, size = 0x12000, scoped, tag = 'internal scratch']
  %s0 = inlined_call_operand.hbm [shape: f32[2,8,32], index: 0, kind: input, shape index: {}]
  %s1 = inlined_call_operand.hbm [shape: f32[1,32], index: 1, kind: input, shape index: {}]
  %s2 = inlined_call_operand.hbm [shape: f32[1,32], index: 2, kind: input, shape index: {}]
  %s3 = inlined_call_operand.hbm [shape: f32[32,96], index: 3, kind: input, shape index: {}]
  %s4 = inlined_call_operand.hbm [shape: f32[1,96], index: 4, kind: input, shape index: {}]
  %s5 = inlined_call_operand.vmem [shape: f32[8,32], index: 5, kind: input, shape index: {}]
  %s6 = inlined_call_operand.hbm [shape: f32[1,32], index: 6, kind: input, shape index: {}]
  %s7 = inlined_call_operand.vmem [shape: f32[1,32], index: 7, kind: input, shape index: {}]
  %s8 = inlined_call_operand.vmem [shape: s32[2,1,8], index: 8, kind: input, shape index: {}]
  %s9 = inlined_call_operand.hbm [shape: f32[32,32], index: 9, kind: input, shape index: {}]
  %s10 = inlined_call_operand.vmem [shape: f32[1,32], index: 10, kind: input, shape index: {}]
  %s11 = inlined_call_operand.hbm [shape: f32[2,8,32], index: 11, kind: output, shape index: {}]
  %s12 = sld [smem:[#allocation0]]
  $region105: #{tpu_custom_call.1} parent=0
    _
  %s14 = ssub.s32 1, %s12
  %s15 = scalar_select 0, %s14, %s12
  $region1: #{tpu_custom_call.1} parent=0
    #allocation2 [shape = 'u8[8192]{0}', space=vmem, size = 0x2000, scoped, tag = 'input window, operand 0']
    #allocation3 [shape = 's32[2]{0}', space=sflag, size = 0x8, scoped, tag = 'scoped memory for tpu_custom_call.1']
    #allocation4 [shape = 's32[2]{0}', space=sflag, size = 0x8, scoped, tag = 'scoped memory for tpu_custom_call.1']
    #allocation5 [shape = 'u8[512]{0}', space=vmem, size = 0x400, scoped, tag = 'input window, operand 1, single buffered']
    #allocation6 [shape = 's32[1]{0}', space=sflag, size = 0x4, scoped, tag = 'scoped memory for tpu_custom_call.1']
    #allocation7 [shape = 'u8[512]{0}', space=vmem, size = 0x400, scoped, tag = 'input window, operand 2, single buffered']
    #allocation8 [shape = 'u8[16384]{0}', space=vmem, size = 0x4000, scoped, tag = 'input window, operand 3, single buffered']
    #allocation9 [shape = 's32[1]{0}', space=sflag, size = 0x4, scoped, tag = 'scoped memory for tpu_custom_call.1']
    #allocation10 [shape = 'u8[512]{0}', space=vmem, size = 0x400, scoped, tag = 'input window, operand 4, single buffered']
    #allocation11 [shape = 'u8[512]{0}', space=vmem, size = 0x400, scoped, tag = 'input window, operand 6, single buffered']
    #allocation12 [shape = 's32[1]{0}', space=sflag, size = 0x4, scoped, tag = 'scoped memory for tpu_custom_call.1']
    #allocation13 [shape = 'u8[16384]{0}', space=vmem, size = 0x4000, scoped, tag = 'input window, operand 9, single buffered']
    #allocation14 [shape = 'u8[8192]{0}', space=vmem, size = 0x2000, scoped, tag = 'output window, operand 0']
    %16 = vsyncpa [#allocation3], 0
    %s17 = scalar_lea.sflag [#allocation3], 1
    %18 = vsyncpa %s17, 0
    %19 = vsyncpa [#allocation6], 0
    %20 = vsyncpa [#allocation9], 0
    %21 = vsyncpa [#allocation12], 0
    %22 = vsyncpa [#allocation4], 0
    %s23 = scalar_lea.sflag [#allocation4], 1
    %24 = vsyncpa %s23, 0
    loop: start=0, step=1, limit=4
    $region2: #{tpu_custom_call.1} parent=1 // loop_pre_header
      _
    $region3: #{tpu_custom_call.1} parent=1 // loop_header
      %s26 = sphi 0, %s30
      %p27 = scmp.ge.s32.totalorder %s26, 4
      %s36 = sphi 0, %s38
      %s39 = sphi 0, %s36
      %s40 = sphi 0, %s39
      %s56 = sphi 0, %s40
      %s60 = sphi 0, %s60
      %s62 = sphi 0, %s60
      %s63 = sphi 0, %s62
      %s77 = sphi 0, %s63
      %s81 = sphi 0, %s81
      %s83 = sphi 0, %s81
      %s84 = sphi 0, %s83
      %s98 = sphi 0, %s84
      %s102 = sphi 0, %s102
      %s104 = sphi 0, %s102
      %s105 = sphi 0, %s104
      %s119 = sphi 0, %s105
      %s123 = sphi 0, %s123
      %s125 = sphi 0, %s123
      %s126 = sphi 0, %s125
      %s140 = sphi 0, %s126
      %s144 = sphi 0, %s144
      %s146 = sphi 0, %s144
      %s147 = sphi 0, %s146
      %s161 = sphi 0, %s147
      %s165 = sphi 0, %s165
      %s167 = sphi 0, %s165
      %s168 = sphi 0, %s167
      %s182 = sphi 0, %s168
      %s186 = sphi 0, %s186
      %s188 = sphi 0, %s186
      %s189 = sphi 0, %s188
      %s203 = sphi 0, %s189
      %s209 = sphi 0, %s211
      %s212 = sphi 0, %s209
      %s213 = sphi 0, %s212
      %s229 = sphi 0, %s213
      %s233 = sphi 0, %s233
      %s235 = sphi 0, %s233
      %s236 = sphi 0, %s235
      %s250 = sphi 0, %s236
      %s254 = sphi 0, %s254
      %s256 = sphi 0, %s254
      %s257 = sphi 0, %s256
      %s271 = sphi 0, %s257
      %s277 = sphi 0, %s279
      %s280 = sphi 0, %s277
      %s281 = sphi 0, %s280
      %s297 = sphi 0, %s281
    $region4: #{tpu_custom_call.1} parent=1 // loop_header_branch
      %29 = sbr.rel (%p27) target = $region8
    $region5: #{tpu_custom_call.1} parent=1 // loop_body
      %s31 = ssub.s32 %s26, 1
      %s32 = ssub.s32 %s26, 2
      %s33 = sadd.s32 %s26, 1
      %s34 = ssub.s32 %s26, %s33
      %p35 = scmp.eq.s32.totalorder %s34, 0
      %s37 = sadd.s32 %s36, 1
      %s38 = scalar_select %p35, %s36, %s37
      %p41 = pneg %p35
      %p42 = scmp.eq.s32.totalorder %s26, 1
      %p43 = por %p41, %p42
      %p44 = scmp.ne.s32.totalorder %s36, %s39
      %p45 = scmp.eq.s32.totalorder %s26, 0
      %p46 = por %p44, %p45
      %p47 = scmp.ne.s32.totalorder %s36, %s39
      %p48 = scmp.eq.s32.totalorder %s31, 1
      %p49 = por %p47, %p48
      %p50 = scmp.ne.s32.totalorder %s39, %s40
      %p51 = scmp.eq.s32.totalorder %s31, 0
      %p52 = por %p50, %p51
      %p53 = scmp.ne.s32.totalorder %s39, %s40
      %p54 = scmp.eq.s32.totalorder %s32, 1
      %p55 = por %p53, %p54
      %p57 = scmp.ne.s32.totalorder %s40, %s56
      %p58 = scmp.eq.s32.totalorder %s32, 0
      %p59 = por %p57, %p58
      %s61 = sadd.s32 %s60, 1
      %p64 = scmp.eq.s32.totalorder %s26, 1
      %p65 = scmp.ne.s32.totalorder %s60, %s62
      %p66 = scmp.eq.s32.totalorder %s26, 0
      %p67 = por %p65, %p66
      %p68 = scmp.ne.s32.totalorder %s60, %s62
      %p69 = scmp.eq.s32.totalorder %s31, 1
      %p70 = por %p68, %p69
      %p71 = scmp.ne.s32.totalorder %s62, %s63
      %p72 = scmp.eq.s32.totalorder %s31, 0
      %p73 = por %p71, %p72
      %p74 = scmp.ne.s32.totalorder %s62, %s63
      %p75 = scmp.eq.s32.totalorder %s32, 1
      %p76 = por %p74, %p75
      %p78 = scmp.ne.s32.totalorder %s63, %s77
      %p79 = scmp.eq.s32.totalorder %s32, 0
      %p80 = por %p78, %p79
      %s82 = sadd.s32 %s81, 1
      %p85 = scmp.eq.s32.totalorder %s26, 1
      %p86 = scmp.ne.s32.totalorder %s81, %s83
      %p87 = scmp.eq.s32.totalorder %s26, 0
      %p88 = por %p86, %p87
      %p89 = scmp.ne.s32.totalorder %s81, %s83
      %p90 = scmp.eq.s32.totalorder %s31, 1
      %p91 = por %p89, %p90
      %p92 = scmp.ne.s32.totalorder %s83, %s84
      %p93 = scmp.eq.s32.totalorder %s31, 0
      %p94 = por %p92, %p93
      %p95 = scmp.ne.s32.totalorder %s83, %s84
      %p96 = scmp.eq.s32.totalorder %s32, 1
      %p97 = por %p95, %p96
      %p99 = scmp.ne.s32.totalorder %s84, %s98
      %p100 = scmp.eq.s32.totalorder %s32, 0
      %p101 = por %p99, %p100
      %s103 = sadd.s32 %s102, 1
      %p106 = scmp.eq.s32.totalorder %s26, 1
      %p107 = scmp.ne.s32.totalorder %s102, %s104
      %p108 = scmp.eq.s32.totalorder %s26, 0
      %p109 = por %p107, %p108
      %p110 = scmp.ne.s32.totalorder %s102, %s104
      %p111 = scmp.eq.s32.totalorder %s31, 1
      %p112 = por %p110, %p111
      %p113 = scmp.ne.s32.totalorder %s104, %s105
      %p114 = scmp.eq.s32.totalorder %s31, 0
      %p115 = por %p113, %p114
      %p116 = scmp.ne.s32.totalorder %s104, %s105
      %p117 = scmp.eq.s32.totalorder %s32, 1
      %p118 = por %p116, %p117
      %p120 = scmp.ne.s32.totalorder %s105, %s119
      %p121 = scmp.eq.s32.totalorder %s32, 0
      %p122 = por %p120, %p121
      %s124 = sadd.s32 %s123, 1
      %p127 = scmp.eq.s32.totalorder %s26, 1
      %p128 = scmp.ne.s32.totalorder %s123, %s125
      %p129 = scmp.eq.s32.totalorder %s26, 0
      %p130 = por %p128, %p129
      %p131 = scmp.ne.s32.totalorder %s123, %s125
      %p132 = scmp.eq.s32.totalorder %s31, 1
      %p133 = por %p131, %p132
      %p134 = scmp.ne.s32.totalorder %s125, %s126
      %p135 = scmp.eq.s32.totalorder %s31, 0
      %p136 = por %p134, %p135
      %p137 = scmp.ne.s32.totalorder %s125, %s126
      %p138 = scmp.eq.s32.totalorder %s32, 1
      %p139 = por %p137, %p138
      %p141 = scmp.ne.s32.totalorder %s126, %s140
      %p142 = scmp.eq.s32.totalorder %s32, 0
      %p143 = por %p141, %p142
      %s145 = sadd.s32 %s144, 1
      %p148 = scmp.eq.s32.totalorder %s26, 1
      %p149 = scmp.ne.s32.totalorder %s144, %s146
      %p150 = scmp.eq.s32.totalorder %s26, 0
      %p151 = por %p149, %p150
      %p152 = scmp.ne.s32.totalorder %s144, %s146
      %p153 = scmp.eq.s32.totalorder %s31, 1
      %p154 = por %p152, %p153
      %p155 = scmp.ne.s32.totalorder %s146, %s147
      %p156 = scmp.eq.s32.totalorder %s31, 0
      %p157 = por %p155, %p156
      %p158 = scmp.ne.s32.totalorder %s146, %s147
      %p159 = scmp.eq.s32.totalorder %s32, 1
      %p160 = por %p158, %p159
      %p162 = scmp.ne.s32.totalorder %s147, %s161
      %p163 = scmp.eq.s32.totalorder %s32, 0
      %p164 = por %p162, %p163
      %s166 = sadd.s32 %s165, 1
      %p169 = scmp.eq.s32.totalorder %s26, 1
      %p170 = scmp.ne.s32.totalorder %s165, %s167
      %p171 = scmp.eq.s32.totalorder %s26, 0
      %p172 = por %p170, %p171
      %p173 = scmp.ne.s32.totalorder %s165, %s167
      %p174 = scmp.eq.s32.totalorder %s31, 1
      %p175 = por %p173, %p174
      %p176 = scmp.ne.s32.totalorder %s167, %s168
      %p177 = scmp.eq.s32.totalorder %s31, 0
      %p178 = por %p176, %p177
      %p179 = scmp.ne.s32.totalorder %s167, %s168
      %p180 = scmp.eq.s32.totalorder %s32, 1
      %p181 = por %p179, %p180
      %p183 = scmp.ne.s32.totalorder %s168, %s182
      %p184 = scmp.eq.s32.totalorder %s32, 0
      %p185 = por %p183, %p184
      %s187 = sadd.s32 %s186, 1
      %p190 = scmp.eq.s32.totalorder %s26, 1
      %p191 = scmp.ne.s32.totalorder %s186, %s188
      %p192 = scmp.eq.s32.totalorder %s26, 0
      %p193 = por %p191, %p192
      %p194 = scmp.ne.s32.totalorder %s186, %s188
      %p195 = scmp.eq.s32.totalorder %s31, 1
      %p196 = por %p194, %p195
      %p197 = scmp.ne.s32.totalorder %s188, %s189
      %p198 = scmp.eq.s32.totalorder %s31, 0
      %p199 = por %p197, %p198
      %p200 = scmp.ne.s32.totalorder %s188, %s189
      %p201 = scmp.eq.s32.totalorder %s32, 1
      %p202 = por %p200, %p201
      %p204 = scmp.ne.s32.totalorder %s189, %s203
      %p205 = scmp.eq.s32.totalorder %s32, 0
      %p206 = por %p204, %p205
      %s207 = ssub.s32 %s26, %s33
      %p208 = scmp.eq.s32.totalorder %s207, 0
      %s210 = sadd.s32 %s209, 1
      %s211 = scalar_select %p208, %s209, %s210
      %p214 = pneg %p208
      %p215 = scmp.eq.s32.totalorder %s26, 1
      %p216 = por %p214, %p215
      %p217 = scmp.ne.s32.totalorder %s209, %s212
      %p218 = scmp.eq.s32.totalorder %s26, 0
      %p219 = por %p217, %p218
      %p220 = scmp.ne.s32.totalorder %s209, %s212
      %p221 = scmp.eq.s32.totalorder %s31, 1
      %p222 = por %p220, %p221
      %p223 = scmp.ne.s32.totalorder %s212, %s213
      %p224 = scmp.eq.s32.totalorder %s31, 0
      %p225 = por %p223, %p224
      %p226 = scmp.ne.s32.totalorder %s212, %s213
      %p227 = scmp.eq.s32.totalorder %s32, 1
      %p228 = por %p226, %p227
      %p230 = scmp.ne.s32.totalorder %s213, %s229
      %p231 = scmp.eq.s32.totalorder %s32, 0
      %p232 = por %p230, %p231
      %s234 = sadd.s32 %s233, 1
      %p237 = scmp.eq.s32.totalorder %s26, 1
      %p238 = scmp.ne.s32.totalorder %s233, %s235
      %p239 = scmp.eq.s32.totalorder %s26, 0
      %p240 = por %p238, %p239
      %p241 = scmp.ne.s32.totalorder %s233, %s235
      %p242 = scmp.eq.s32.totalorder %s31, 1
      %p243 = por %p241, %p242
      %p244 = scmp.ne.s32.totalorder %s235, %s236
      %p245 = scmp.eq.s32.totalorder %s31, 0
      %p246 = por %p244, %p245
      %p247 = scmp.ne.s32.totalorder %s235, %s236
      %p248 = scmp.eq.s32.totalorder %s32, 1
      %p249 = por %p247, %p248
      %p251 = scmp.ne.s32.totalorder %s236, %s250
      %p252 = scmp.eq.s32.totalorder %s32, 0
      %p253 = por %p251, %p252
      %s255 = sadd.s32 %s254, 1
      %p258 = scmp.eq.s32.totalorder %s26, 1
      %p259 = scmp.ne.s32.totalorder %s254, %s256
      %p260 = scmp.eq.s32.totalorder %s26, 0
      %p261 = por %p259, %p260
      %p262 = scmp.ne.s32.totalorder %s254, %s256
      %p263 = scmp.eq.s32.totalorder %s31, 1
      %p264 = por %p262, %p263
      %p265 = scmp.ne.s32.totalorder %s256, %s257
      %p266 = scmp.eq.s32.totalorder %s31, 0
      %p267 = por %p265, %p266
      %p268 = scmp.ne.s32.totalorder %s256, %s257
      %p269 = scmp.eq.s32.totalorder %s32, 1
      %p270 = por %p268, %p269
      %p272 = scmp.ne.s32.totalorder %s257, %s271
      %p273 = scmp.eq.s32.totalorder %s32, 0
      %p274 = por %p272, %p273
      %s275 = ssub.s32 %s26, %s33
      %p276 = scmp.eq.s32.totalorder %s275, 0
      %s278 = sadd.s32 %s277, 1
      %s279 = scalar_select %p276, %s277, %s278
      %p282 = pneg %p276
      %p283 = scmp.eq.s32.totalorder %s26, 1
      %p284 = por %p282, %p283
      %p285 = scmp.ne.s32.totalorder %s277, %s280
      %p286 = scmp.eq.s32.totalorder %s26, 0
      %p287 = por %p285, %p286
      %p288 = scmp.ne.s32.totalorder %s277, %s280
      %p289 = scmp.eq.s32.totalorder %s31, 1
      %p290 = por %p288, %p289
      %p291 = scmp.ne.s32.totalorder %s280, %s281
      %p292 = scmp.eq.s32.totalorder %s31, 0
      %p293 = por %p291, %p292
      %p294 = scmp.ne.s32.totalorder %s280, %s281
      %p295 = scmp.eq.s32.totalorder %s32, 1
      %p296 = por %p294, %p295
      %p298 = scmp.ne.s32.totalorder %s281, %s297
      %p299 = scmp.eq.s32.totalorder %s32, 0
      %p300 = por %p298, %p299
      %p301 = scmp.le.s32.totalorder 1, %s26
      %p302 = scmp.lt.s32.totalorder %s26, 3
      %p303 = pnand %p301, %p302
      %p304 = pneg %p303
      // Predicated region
      $region9: #{tpu_custom_call.1} parent=5 // pred_check
        _
      $region10: #{tpu_custom_call.1} parent=5 // pred_check_branch
        %306 = sbr.rel (%p303) target = $region12
      $region11: #{tpu_custom_call.1} parent=5 // pred_region
        %s307 = ssub.s32 %s26, 1
        // Predicated region
        $region13: #{tpu_custom_call.1} parent=11 // pred_check
          %p308 = pneg %p73
        $region14: #{tpu_custom_call.1} parent=11 // pred_check_branch
          %310 = sbr.rel (%p308) target = $region16
        $region15: #{tpu_custom_call.1} parent=11 // pred_region
          %s312 = ssub.s32 16, 16
          %313 = vsyncadd [#allocation6], %s312
          %s315 = sshll.u32 [#allocation5], 4
          %s316 = int_to_ptr.vmem [resolvable:$true] %s315
          %318 = dma.hbm_to_vmem [thread:$0]  %s1, 16, %s316, [#allocation6]
        $region16: #{tpu_custom_call.1} parent=11 // pred_fallthru
          _
        // Predicated region
        $region17: #{tpu_custom_call.1} parent=11 // pred_check
          %p319 = pneg %p94
        $region18: #{tpu_custom_call.1} parent=11 // pred_check_branch
          %321 = sbr.rel (%p319) target = $region20
        $region19: #{tpu_custom_call.1} parent=11 // pred_region
          %s323 = ssub.s32 16, 16
          %324 = vsyncadd [#allocation6], %s323
          %s326 = sshll.u32 [#allocation7], 4
          %s327 = int_to_ptr.vmem [resolvable:$true] %s326
          %329 = dma.hbm_to_vmem [thread:$0]  %s2, 16, %s327, [#allocation6]
        $region20: #{tpu_custom_call.1} parent=11 // pred_fallthru
          _
        // Predicated region
        $region21: #{tpu_custom_call.1} parent=11 // pred_check
          %p330 = pneg %p115
        $region22: #{tpu_custom_call.1} parent=11 // pred_check_branch
          %332 = sbr.rel (%p330) target = $region24
        $region23: #{tpu_custom_call.1} parent=11 // pred_region
          %s334 = ssub.s32 512, 512
          %335 = vsyncadd [#allocation9], %s334
          %s336 = sshll.u32 [#allocation8], 4
          %s337 = int_to_ptr.vmem [resolvable:$true] %s336
          %342 = dma.hbm_to_vmem [thread:$0]  %s3, 512, %s337, [#allocation9], 128, 128, 8
        $region24: #{tpu_custom_call.1} parent=11 // pred_fallthru
          _
        // Predicated region
        $region25: #{tpu_custom_call.1} parent=11 // pred_check
          %p343 = pneg %p136
        $region26: #{tpu_custom_call.1} parent=11 // pred_check_branch
          %345 = sbr.rel (%p343) target = $region28
        $region27: #{tpu_custom_call.1} parent=11 // pred_region
          %s347 = ssub.s32 16, 16
          %348 = vsyncadd [#allocation9], %s347
          %s350 = sshll.u32 [#allocation10], 4
          %s351 = int_to_ptr.vmem [resolvable:$true] %s350
          %353 = dma.hbm_to_vmem [thread:$0]  %s4, 16, %s351, [#allocation9]
        $region28: #{tpu_custom_call.1} parent=11 // pred_fallthru
          _
        // Predicated region
        $region29: #{tpu_custom_call.1} parent=11 // pred_check
          %p354 = pneg %p157
        $region30: #{tpu_custom_call.1} parent=11 // pred_check_branch
          %356 = sbr.rel (%p354) target = $region32
        $region31: #{tpu_custom_call.1} parent=11 // pred_region
          _
        $region32: #{tpu_custom_call.1} parent=11 // pred_fallthru
          _
        // Predicated region
        $region33: #{tpu_custom_call.1} parent=11 // pred_check
          %p357 = pneg %p178
        $region34: #{tpu_custom_call.1} parent=11 // pred_check_branch
          %359 = sbr.rel (%p357) target = $region36
        $region35: #{tpu_custom_call.1} parent=11 // pred_region
          %s361 = ssub.s32 16, 16
          %362 = vsyncadd [#allocation12], %s361
          %s364 = sshll.u32 [#allocation11], 4
          %s365 = int_to_ptr.vmem [resolvable:$true] %s364
          %367 = dma.hbm_to_vmem [thread:$0]  %s6, 16, %s365, [#allocation12]
        $region36: #{tpu_custom_call.1} parent=11 // pred_fallthru
          _
        // Predicated region
        $region37: #{tpu_custom_call.1} parent=11 // pred_check
          %p368 = pneg %p199
        $region38: #{tpu_custom_call.1} parent=11 // pred_check_branch
          %370 = sbr.rel (%p368) target = $region40
        $region39: #{tpu_custom_call.1} parent=11 // pred_region
          _
        $region40: #{tpu_custom_call.1} parent=11 // pred_fallthru
          _
        // Predicated region
        $region41: #{tpu_custom_call.1} parent=11 // pred_check
          %p371 = pneg %p246
        $region42: #{tpu_custom_call.1} parent=11 // pred_check_branch
          %373 = sbr.rel (%p371) target = $region44
        $region43: #{tpu_custom_call.1} parent=11 // pred_region
          %s375 = ssub.s32 512, 512
          %376 = vsyncadd [#allocation12], %s375
          %s377 = sshll.u32 [#allocation13], 4
          %s378 = int_to_ptr.vmem [resolvable:$true] %s377
          %383 = dma.hbm_to_vmem [thread:$0]  %s9, 512, %s378, [#allocation12], 128, 128, 8
        $region44: #{tpu_custom_call.1} parent=11 // pred_fallthru
          _
        // Predicated region
        $region45: #{tpu_custom_call.1} parent=11 // pred_check
          %p384 = pneg %p267
        $region46: #{tpu_custom_call.1} parent=11 // pred_check_branch
          %386 = sbr.rel (%p384) target = $region48
        $region47: #{tpu_custom_call.1} parent=11 // pred_region
          _
        $region48: #{tpu_custom_call.1} parent=11 // pred_fallthru
          _
      $region12: #{tpu_custom_call.1} parent=5 // pred_fallthru
        _
      %p387 = scmp.lt.s32.totalorder %s26, 2
      // Predicated region
      $region49: #{tpu_custom_call.1} parent=5 // pred_check
        %p388 = pneg %p387
      $region50: #{tpu_custom_call.1} parent=5 // pred_check_branch
        %390 = sbr.rel (%p388) target = $region52
      $region51: #{tpu_custom_call.1} parent=5 // pred_region
        // Predicated region
        $region53: #{tpu_custom_call.1} parent=51 // pred_check
          %p391 = pneg %p46
        $region54: #{tpu_custom_call.1} parent=51 // pred_check_branch
          %393 = sbr.rel (%p391) target = $region56
        $region55: #{tpu_custom_call.1} parent=51 // pred_region
          %s394 = sand.u32 %s36, 1
          %s395 = scalar_lea.sflag [#allocation3], %s394
          %s396 = sand.u32 %s36, 1
          %s397 = smul.addr %s396, 8
          %s398 = scalar_lea.vmem [#allocation2], %s397
          %s400 = ssub.s32 128, 128
          %401 = vsyncadd %s395, %s400
          %s402 = smul.addr %s26, 128
          %s403 = scalar_lea.hbm %s0, %s402
          %s405 = sshll.u32 %s398, 4
          %s406 = int_to_ptr.vmem [resolvable:$true] %s405
          %408 = dma.hbm_to_vmem [thread:$0]  %s403, 128, %s406, %s395
        $region56: #{tpu_custom_call.1} parent=51 // pred_fallthru
          _
        // Predicated region
        $region57: #{tpu_custom_call.1} parent=51 // pred_check
          %p409 = pneg %p219
        $region58: #{tpu_custom_call.1} parent=51 // pred_check_branch
          %411 = sbr.rel (%p409) target = $region60
        $region59: #{tpu_custom_call.1} parent=51 // pred_region
          %p412 = scmp.lt.s32.totalorder %s26, 1
          %s413 = scalar_select %p412, %s26, 1
          %s414 = scalar_lea.vmem %s8, %s413
        $region60: #{tpu_custom_call.1} parent=51 // pred_fallthru
          _
      $region52: #{tpu_custom_call.1} parent=5 // pred_fallthru
        _
      %p415 = scmp.le.s32.totalorder 1, %s26
      %p416 = scmp.lt.s32.totalorder %s26, 3
      %p417 = pnand %p415, %p416
      %p418 = pneg %p417
      // Predicated region
      $region61: #{tpu_custom_call.1} parent=5 // pred_check
        _
      $region62: #{tpu_custom_call.1} parent=5 // pred_check_branch
        %420 = sbr.rel (%p417) target = $region64
      $region63: #{tpu_custom_call.1} parent=5 // pred_region
        %s421 = ssub.s32 %s26, 1
        %s422 = sand.u32 %s39, 1
        %s423 = scalar_lea.sflag [#allocation3], %s422
        %s424 = sand.u32 %s39, 1
        %s425 = smul.addr %s424, 8
        %s426 = scalar_lea.vmem [#allocation2], %s425
        // Predicated region
        $region65: #{tpu_custom_call.1} parent=63 // pred_check
          %p427 = pneg %p52
        $region66: #{tpu_custom_call.1} parent=63 // pred_check_branch
          %429 = sbr.rel (%p427) target = $region68
        $region67: #{tpu_custom_call.1} parent=63 // pred_region
          %430 = dma.done %s423, 128
        $region68: #{tpu_custom_call.1} parent=63 // pred_fallthru
          _
        // Predicated region
        $region69: #{tpu_custom_call.1} parent=63 // pred_check
          %p431 = pneg %p73
        $region70: #{tpu_custom_call.1} parent=63 // pred_check_branch
          %433 = sbr.rel (%p431) target = $region72
        $region71: #{tpu_custom_call.1} parent=63 // pred_region
          %434 = dma.done [#allocation6], 16
        $region72: #{tpu_custom_call.1} parent=63 // pred_fallthru
          _
        // Predicated region
        $region73: #{tpu_custom_call.1} parent=63 // pred_check
          %p435 = pneg %p94
        $region74: #{tpu_custom_call.1} parent=63 // pred_check_branch
          %437 = sbr.rel (%p435) target = $region76
        $region75: #{tpu_custom_call.1} parent=63 // pred_region
          %438 = dma.done [#allocation6], 16
        $region76: #{tpu_custom_call.1} parent=63 // pred_fallthru
          _
        // Predicated region
        $region77: #{tpu_custom_call.1} parent=63 // pred_check
          %p439 = pneg %p115
        $region78: #{tpu_custom_call.1} parent=63 // pred_check_branch
          %441 = sbr.rel (%p439) target = $region80
        $region79: #{tpu_custom_call.1} parent=63 // pred_region
          %442 = dma.done [#allocation9], 512
        $region80: #{tpu_custom_call.1} parent=63 // pred_fallthru
          _
        // Predicated region
        $region81: #{tpu_custom_call.1} parent=63 // pred_check
          %p443 = pneg %p136
        $region82: #{tpu_custom_call.1} parent=63 // pred_check_branch
          %445 = sbr.rel (%p443) target = $region84
        $region83: #{tpu_custom_call.1} parent=63 // pred_region
          %446 = dma.done [#allocation9], 16
        $region84: #{tpu_custom_call.1} parent=63 // pred_fallthru
          _
        // Predicated region
        $region85: #{tpu_custom_call.1} parent=63 // pred_check
          %p447 = pneg %p178
        $region86: #{tpu_custom_call.1} parent=63 // pred_check_branch
          %449 = sbr.rel (%p447) target = $region88
        $region87: #{tpu_custom_call.1} parent=63 // pred_region
          %450 = dma.done [#allocation12], 16
        $region88: #{tpu_custom_call.1} parent=63 // pred_fallthru
          _
        // Predicated region
        $region89: #{tpu_custom_call.1} parent=63 // pred_check
          %p451 = pneg %p246
        $region90: #{tpu_custom_call.1} parent=63 // pred_check_branch
          %453 = sbr.rel (%p451) target = $region92
        $region91: #{tpu_custom_call.1} parent=63 // pred_region
          %454 = dma.done [#allocation12], 512
        $region92: #{tpu_custom_call.1} parent=63 // pred_fallthru
          _
        %s455 = sand.u32 %s39, 1
        %s456 = scalar_lea.sflag [#allocation3], %s455
        %s457 = sand.u32 %s39, 1
        %s458 = smul.addr %s457, 8
        %s459 = scalar_lea.vmem [#allocation2], %s458
        %p460 = pneg %p52
        %p461 = pneg %p49
        %p462 = pneg %p73
        %p463 = pneg %p70
        %p464 = pneg %p94
        %p465 = pneg %p91
        %p466 = pneg %p115
        %p467 = pneg %p112
        %p468 = pneg %p136
        %p469 = pneg %p133
        %p470 = pneg %p157
        %p471 = pneg %p154
        %p472 = pneg %p178
        %p473 = pneg %p175
        %p474 = pneg %p199
        %p475 = pneg %p196
        %p476 = scmp.lt.s32.totalorder %s31, 1
        %s477 = scalar_select %p476, %s31, 1
        %s478 = scalar_lea.vmem %s8, %s477
        %p479 = pneg %p225
        %p480 = pneg %p222
        %p481 = pneg %p246
        %p482 = pneg %p243
        %p483 = pneg %p267
        %p484 = pneg %p264
        %p485 = pneg %p293
        %p486 = pneg %p290
        %s487 = sand.u32 %s280, 1
        %s488 = scalar_lea.sflag [#allocation4], %s487
        %s489 = sand.u32 %s280, 1
        %s490 = smul.addr %s489, 8
        %s491 = scalar_lea.vmem [#allocation14], %s490
        %p492 = scmp.lt.s32.totalorder %s31, 1
        %s493 = scalar_select %p492, %s31, 1
        %s494 = scalar_lea.vmem %s8, %s493
        %v495 = vld [vmem:[%s426] sm:$0xff]
        %vm496 = vcmask 261120
        %v497 = vsel %vm496, %v495, 0.0
        %498 = vadd.xlane.f32.xlu0 %v497
        %v499 = vpop.xlane.xlu0 %498
        %v500 = vrcp.pop 32.0
        %v501 = vmul.f32 %v499, %v500
        %v502 = vsub.f32 %v495, %v501
        %v503 = vmul.f32 %v502, %v502
        %v504 = vsel %vm496, %v503, 0.0
        %505 = vadd.xlane.f32.xlu0 %v504
        %v506 = vpop.xlane.xlu0 %505
        %v507 = vmul.f32 %v506, %v500
        %v508 = vadd.f32 %v507, 1e-05
        %v509 = vrsqrt.pop %v508
        %v510 = vmul.f32 %v502, %v509
        %v511 = vld [vmem:[#allocation5] sm:$0x1]
        %v513 = vlaneseq
        %v514 = vshrl.u32 %v513, 7
        %v515 = vsub.s32 0, %v514
        %v516 = vrot.slane %v511, %v515
        %v518 = vmul.f32 %v510, %v516
        %v519 = vld [vmem:[#allocation7] sm:$0x1]
        %v521 = vlaneseq
        %v522 = vshrl.u32 %v521, 7
        %v523 = vsub.s32 0, %v522
        %v524 = vrot.slane %v519, %v523
        %v526 = vadd.f32 %v518, %v524
        %v527 = vld [vmem:[#allocation8] sm:$0xff]
        %v528 = vld [vmem:[#allocation8 + $0x8] sm:$0xff]
        %v529 = vld [vmem:[#allocation8 + $0x10] sm:$0xff]
        %v530 = vld [vmem:[#allocation8 + $0x18] sm:$0xff]
        %v531 = vld [vmem:[#allocation10] sm:$0x1]
        %v533 = vlaneseq
        %v534 = vshrl.u32 %v533, 7
        %v535 = vsub.s32 0, %v534
        %v536 = vrot.slane %v531, %v535
        %v539 = vsel %vm496, %v526, 0
        %541 = vmatprep.subr.mxu0 0.0
        %542 = vmatpush1.msra.mxu0 0.0
        %543 = vmatprep.subr.mxu0 0.0
        %544 = vmatpush1.msra.mxu0 0.0
        %545 = vmatprep.subr.mxu0 0.0
        %546 = vmatpush1.msra.mxu0 0.0
        %547 = vmatprep.subr.mxu0 0.0
        %548 = vmatpush1.msra.mxu0 0.0
        %549 = vmatprep.subr.mxu0 0.0
        %550 = vmatpush1.msra.mxu0 0.0
        %551 = vmatprep.subr.mxu0 0.0
        %552 = vmatpush1.msra.mxu0 0.0
        %553 = vmatprep.subr.mxu0 0.0
        %554 = vmatpush1.msra.mxu0 0.0
        %555 = vmatprep.subr.mxu0 0.0
        %556 = vmatpush1.msra.mxu0 0.0
        %557 = vmatprep.subr.mxu0 0.0
        %558 = vmatpush1.msra.mxu0 0.0
        %559 = vmatprep.subr.mxu0 0.0
        %560 = vmatpush1.msra.mxu0 0.0
        %561 = vmatprep.subr.mxu0 0.0
        %562 = vmatpush1.msra.mxu0 0.0
        %563 = vmatprep.subr.mxu0 0.0
        %564 = vmatpush1.msra.mxu0 0.0
        %565 = vmatprep.subr.mxu0 0.0
        %566 = vmatpush1.msra.mxu0 %v530
        %567 = vmatprep.subr.mxu0 0.0
        %568 = vmatpush1.msra.mxu0 %v529
        %569 = vmatprep.subr.mxu0 0.0
        %570 = vmatpush1.msra.mxu0 %v528
        %571 = vmatprep.subr.mxu0 0.0
        %572 = vmatpush1.msra.mxu0 %v527
        %573 = vmatprep.subr.mxu0 0.0
        %574 = vmatpush2.msra.mxu0 0.0
        %575 = vmatprep.subr.mxu0 0.0
        %576 = vmatpush2.msra.mxu0 0.0
        %577 = vmatprep.subr.mxu0 0.0
        %578 = vmatpush2.msra.mxu0 0.0
        %579 = vmatprep.subr.mxu0 0.0
        %580 = vmatpush2.msra.mxu0 0.0
        %581 = vmatprep.subr.mxu0 0.0
        %582 = vmatpush2.msra.mxu0 0.0
        %583 = vmatprep.subr.mxu0 0.0
        %584 = vmatpush2.msra.mxu0 0.0
        %585 = vmatprep.subr.mxu0 0.0
        %586 = vmatpush2.msra.mxu0 0.0
        %587 = vmatprep.subr.mxu0 0.0
        %588 = vmatpush2.msra.mxu0 0.0
        %589 = vmatprep.subr.mxu0 0.0
        %590 = vmatpush2.msra.mxu0 0.0
        %591 = vmatprep.subr.mxu0 0.0
        %592 = vmatpush2.msra.mxu0 0.0
        %593 = vmatprep.subr.mxu0 0.0
        %594 = vmatpush2.msra.mxu0 0.0
        %595 = vmatprep.subr.mxu0 0.0
        %596 = vmatpush2.msra.mxu0 0.0
        %597 = vmatprep.subr.mxu0 0.0
        %598 = vmatpush2.msra.mxu0 0.0
        %599 = vmatprep.subr.mxu0 0.0
        %600 = vmatpush2.msra.mxu0 0.0
        %601 = vmatprep.subr.mxu0 0.0
        %602 = vmatpush2.msra.mxu0 0.0
        %603 = vmatprep.subr.mxu0 0.0
        %604 = vmatpush2.msra.mxu0 0.0
        %605 = vmatprep.mubr.f32.mxu0 0.0
        %606 = vmatmul.mubr.f32.gmra.mxu0 %v539
        %v607 = vpop.f32.mrf.mxu0
        %v608 = vadd.f32 %v536, %v607
        %v609 = vpop.f32.mrf.mxu0
        %610 = vdwg.mxu0
        %v611 = vld [vmem:[%s5] sm:$0xff]
        %v612 = vld [vmem:[#allocation11] sm:$0x1]
        %v614 = vlaneseq
        %v615 = vshrl.u32 %v614, 7
        %v616 = vsub.s32 0, %v615
        %v617 = vrot.slane %v612, %v616
        %v619 = vadd.f32 %v608, %v617
        %v620 = vld [vmem:[%s7] sm:$0x1]
        %v622 = vlaneseq
        %v623 = vshrl.u32 %v622, 7
        %v624 = vsub.s32 0, %v623
        %v625 = vrot.slane %v620, %v624
        %v627 = vadd.f32 %v608, %v625
        %v628 = vld [vmem:[%s494] sm:$0x1]
        %vm629 = vcmp.ne.s32.totalorder %v628, 0
        %vm630 = vcmask 64512
        %v632 = vsel %vm630, %v627, 0
        %v635 = vsel %vm630, %v611, 0
        %637 = vmatprep.subr.mxu0 0.0
        %638 = vmatpush1.xpose.msra.mxu0 0.0
        %639 = vmatprep.subr.mxu0 0.0
        %640 = vmatpush1.xpose.msra.mxu0 0.0
        %641 = vmatprep.subr.mxu0 0.0
        %642 = vmatpush1.xpose.msra.mxu0 0.0
        %643 = vmatprep.subr.mxu0 0.0
        %644 = vmatpush1.xpose.msra.mxu0 0.0
        %645 = vmatprep.subr.mxu0 0.0
        %646 = vmatpush1.xpose.msra.mxu0 0.0
        %647 = vmatprep.subr.mxu0 0.0
        %648 = vmatpush1.xpose.msra.mxu0 0.0
        %649 = vmatprep.subr.mxu0 0.0
        %650 = vmatpush1.xpose.msra.mxu0 0.0
        %651 = vmatprep.subr.mxu0 0.0
        %652 = vmatpush1.xpose.msra.mxu0 0.0
        %653 = vmatprep.subr.mxu0 0.0
        %654 = vmatpush1.xpose.msra.mxu0 0.0
        %655 = vmatprep.subr.mxu0 0.0
        %656 = vmatpush1.xpose.msra.mxu0 0.0
        %657 = vmatprep.subr.mxu0 0.0
        %658 = vmatpush1.xpose.msra.mxu0 0.0
        %659 = vmatprep.subr.mxu0 0.0
        %660 = vmatpush1.xpose.msra.mxu0 0.0
        %661 = vmatprep.subr.mxu0 0.0
        %662 = vmatpush1.xpose.msra.mxu0 0.0
        %663 = vmatprep.subr.mxu0 0.0
        %664 = vmatpush1.xpose.msra.mxu0 0.0
        %665 = vmatprep.subr.mxu0 0.0
        %666 = vmatpush1.xpose.msra.mxu0 0.0
        %667 = vmatprep.subr.mxu0 0.0
        %668 = vmatpush1.xpose.msra.mxu0 %v635
        %669 = vmatprep.subr.mxu0 0.0
        %670 = vmatpush2.xpose.msra.mxu0 0.0
        %671 = vmatprep.subr.mxu0 0.0
        %672 = vmatpush2.xpose.msra.mxu0 0.0
        %673 = vmatprep.subr.mxu0 0.0
        %674 = vmatpush2.xpose.msra.mxu0 0.0
        %675 = vmatprep.subr.mxu0 0.0
        %676 = vmatpush2.xpose.msra.mxu0 0.0
        %677 = vmatprep.subr.mxu0 0.0
        %678 = vmatpush2.xpose.msra.mxu0 0.0
        %679 = vmatprep.subr.mxu0 0.0
        %680 = vmatpush2.xpose.msra.mxu0 0.0
        %681 = vmatprep.subr.mxu0 0.0
        %682 = vmatpush2.xpose.msra.mxu0 0.0
        %683 = vmatprep.subr.mxu0 0.0
        %684 = vmatpush2.xpose.msra.mxu0 0.0
        %685 = vmatprep.subr.mxu0 0.0
        %686 = vmatpush2.xpose.msra.mxu0 0.0
        %687 = vmatprep.subr.mxu0 0.0
        %688 = vmatpush2.xpose.msra.mxu0 0.0
        %689 = vmatprep.subr.mxu0 0.0
        %690 = vmatpush2.xpose.msra.mxu0 0.0
        %691 = vmatprep.subr.mxu0 0.0
        %692 = vmatpush2.xpose.msra.mxu0 0.0
        %693 = vmatprep.subr.mxu0 0.0
        %694 = vmatpush2.xpose.msra.mxu0 0.0
        %695 = vmatprep.subr.mxu0 0.0
        %696 = vmatpush2.xpose.msra.mxu0 0.0
        %697 = vmatprep.subr.mxu0 0.0
        %698 = vmatpush2.xpose.msra.mxu0 0.0
        %699 = vmatprep.subr.mxu0 0.0
        %700 = vmatpush2.xpose.msra.mxu0 0.0
        %701 = vmatprep.mubr.f32.mxu0 0.0
        %702 = vmatmul.mubr.f32.gmra.mxu0 %v632
        %v703 = vpop.f32.mrf.mxu0
        %v704 = vadd.f32 0.0, %v703
        %v705 = vpop.f32.mrf.mxu0
        %706 = vdwg.mxu0
        %707 = vrot.lane.b32.xlu0 %v627, 120
        %v708 = vpop.permute.xlu0 %707
        %709 = vrot.lane.b32.xlu0 %v611, 120
        %v710 = vpop.permute.xlu0 %709
        %v711 = vsel %vm630, %v708, 0
        %v713 = vsel %vm630, %v710, 0
        %715 = vmatprep.subr.mxu0 0.0
        %716 = vmatpush1.xpose.msra.mxu0 0.0
        %717 = vmatprep.subr.mxu0 0.0
        %718 = vmatpush1.xpose.msra.mxu0 0.0
        %719 = vmatprep.subr.mxu0 0.0
        %720 = vmatpush1.xpose.msra.mxu0 0.0
        %721 = vmatprep.subr.mxu0 0.0
        %722 = vmatpush1.xpose.msra.mxu0 0.0
        %723 = vmatprep.subr.mxu0 0.0
        %724 = vmatpush1.xpose.msra.mxu0 0.0
        %725 = vmatprep.subr.mxu0 0.0
        %726 = vmatpush1.xpose.msra.mxu0 0.0
        %727 = vmatprep.subr.mxu0 0.0
        %728 = vmatpush1.xpose.msra.mxu0 0.0
        %729 = vmatprep.subr.mxu0 0.0
        %730 = vmatpush1.xpose.msra.mxu0 0.0
        %731 = vmatprep.subr.mxu0 0.0
        %732 = vmatpush1.xpose.msra.mxu0 0.0
        %733 = vmatprep.subr.mxu0 0.0
        %734 = vmatpush1.xpose.msra.mxu0 0.0
        %735 = vmatprep.subr.mxu0 0.0
        %736 = vmatpush1.xpose.msra.mxu0 0.0
        %737 = vmatprep.subr.mxu0 0.0
        %738 = vmatpush1.xpose.msra.mxu0 0.0
        %739 = vmatprep.subr.mxu0 0.0
        %740 = vmatpush1.xpose.msra.mxu0 0.0
        %741 = vmatprep.subr.mxu0 0.0
        %742 = vmatpush1.xpose.msra.mxu0 0.0
        %743 = vmatprep.subr.mxu0 0.0
        %744 = vmatpush1.xpose.msra.mxu0 0.0
        %745 = vmatprep.subr.mxu0 0.0
        %746 = vmatpush1.xpose.msra.mxu0 %v713
        %747 = vmatprep.subr.mxu0 0.0
        %748 = vmatpush2.xpose.msra.mxu0 0.0
        %749 = vmatprep.subr.mxu0 0.0
        %750 = vmatpush2.xpose.msra.mxu0 0.0
        %751 = vmatprep.subr.mxu0 0.0
        %752 = vmatpush2.xpose.msra.mxu0 0.0
        %753 = vmatprep.subr.mxu0 0.0
        %754 = vmatpush2.xpose.msra.mxu0 0.0
        %755 = vmatprep.subr.mxu0 0.0
        %756 = vmatpush2.xpose.msra.mxu0 0.0
        %757 = vmatprep.subr.mxu0 0.0
        %758 = vmatpush2.xpose.msra.mxu0 0.0
        %759 = vmatprep.subr.mxu0 0.0
        %760 = vmatpush2.xpose.msra.mxu0 0.0
        %761 = vmatprep.subr.mxu0 0.0
        %762 = vmatpush2.xpose.msra.mxu0 0.0
        %763 = vmatprep.subr.mxu0 0.0
        %764 = vmatpush2.xpose.msra.mxu0 0.0
        %765 = vmatprep.subr.mxu0 0.0
        %766 = vmatpush2.xpose.msra.mxu0 0.0
        %767 = vmatprep.subr.mxu0 0.0
        %768 = vmatpush2.xpose.msra.mxu0 0.0
        %769 = vmatprep.subr.mxu0 0.0
        %770 = vmatpush2.xpose.msra.mxu0 0.0
        %771 = vmatprep.subr.mxu0 0.0
        %772 = vmatpush2.xpose.msra.mxu0 0.0
        %773 = vmatprep.subr.mxu0 0.0
        %774 = vmatpush2.xpose.msra.mxu0 0.0
        %775 = vmatprep.subr.mxu0 0.0
        %776 = vmatpush2.xpose.msra.mxu0 0.0
        %777 = vmatprep.subr.mxu0 0.0
        %778 = vmatpush2.xpose.msra.mxu0 0.0
        %779 = vmatprep.mubr.f32.mxu0 0.0
        %780 = vmatmul.mubr.f32.gmra.mxu0 %v711
        %v781 = vpop.f32.mrf.mxu0
        %v782 = vadd.f32 0.0, %v781
        %v783 = vpop.f32.mrf.mxu0
        %784 = vdwg.mxu0
        %785 = vrot.lane.b32.xlu0 %v627, 112
        %v786 = vpop.permute.xlu0 %785
        %787 = vrot.lane.b32.xlu0 %v611, 112
        %v788 = vpop.permute.xlu0 %787
        %v789 = vsel %vm630, %v786, 0
        %v791 = vsel %vm630, %v788, 0
        %793 = vmatprep.subr.mxu0 0.0
        %794 = vmatpush1.xpose.msra.mxu0 0.0
        %795 = vmatprep.subr.mxu0 0.0
        %796 = vmatpush1.xpose.msra.mxu0 0.0
        %797 = vmatprep.subr.mxu0 0.0
        %798 = vmatpush1.xpose.msra.mxu0 0.0
        %799 = vmatprep.subr.mxu0 0.0
        %800 = vmatpush1.xpose.msra.mxu0 0.0
        %801 = vmatprep.subr.mxu0 0.0
        %802 = vmatpush1.xpose.msra.mxu0 0.0
        %803 = vmatprep.subr.mxu0 0.0
        %804 = vmatpush1.xpose.msra.mxu0 0.0
        %805 = vmatprep.subr.mxu0 0.0
        %806 = vmatpush1.xpose.msra.mxu0 0.0
        %807 = vmatprep.subr.mxu0 0.0
        %808 = vmatpush1.xpose.msra.mxu0 0.0
        %809 = vmatprep.subr.mxu0 0.0
        %810 = vmatpush1.xpose.msra.mxu0 0.0
        %811 = vmatprep.subr.mxu0 0.0
        %812 = vmatpush1.xpose.msra.mxu0 0.0
        %813 = vmatprep.subr.mxu0 0.0
        %814 = vmatpush1.xpose.msra.mxu0 0.0
        %815 = vmatprep.subr.mxu0 0.0
        %816 = vmatpush1.xpose.msra.mxu0 0.0
        %817 = vmatprep.subr.mxu0 0.0
        %818 = vmatpush1.xpose.msra.mxu0 0.0
        %819 = vmatprep.subr.mxu0 0.0
        %820 = vmatpush1.xpose.msra.mxu0 0.0
        %821 = vmatprep.subr.mxu0 0.0
        %822 = vmatpush1.xpose.msra.mxu0 0.0
        %823 = vmatprep.subr.mxu0 0.0
        %824 = vmatpush1.xpose.msra.mxu0 %v791
        %825 = vmatprep.subr.mxu0 0.0
        %826 = vmatpush2.xpose.msra.mxu0 0.0
        %827 = vmatprep.subr.mxu0 0.0
        %828 = vmatpush2.xpose.msra.mxu0 0.0
        %829 = vmatprep.subr.mxu0 0.0
        %830 = vmatpush2.xpose.msra.mxu0 0.0
        %831 = vmatprep.subr.mxu0 0.0
        %832 = vmatpush2.xpose.msra.mxu0 0.0
        %833 = vmatprep.subr.mxu0 0.0
        %834 = vmatpush2.xpose.msra.mxu0 0.0
        %835 = vmatprep.subr.mxu0 0.0
        %836 = vmatpush2.xpose.msra.mxu0 0.0
        %837 = vmatprep.subr.mxu0 0.0
        %838 = vmatpush2.xpose.msra.mxu0 0.0
        %839 = vmatprep.subr.mxu0 0.0
        %840 = vmatpush2.xpose.msra.mxu0 0.0
        %841 = vmatprep.subr.mxu0 0.0
        %842 = vmatpush2.xpose.msra.mxu0 0.0
        %843 = vmatprep.subr.mxu0 0.0
        %844 = vmatpush2.xpose.msra.mxu0 0.0
        %845 = vmatprep.subr.mxu0 0.0
        %846 = vmatpush2.xpose.msra.mxu0 0.0
        %847 = vmatprep.subr.mxu0 0.0
        %848 = vmatpush2.xpose.msra.mxu0 0.0
        %849 = vmatprep.subr.mxu0 0.0
        %850 = vmatpush2.xpose.msra.mxu0 0.0
        %851 = vmatprep.subr.mxu0 0.0
        %852 = vmatpush2.xpose.msra.mxu0 0.0
        %853 = vmatprep.subr.mxu0 0.0
        %854 = vmatpush2.xpose.msra.mxu0 0.0
        %855 = vmatprep.subr.mxu0 0.0
        %856 = vmatpush2.xpose.msra.mxu0 0.0
        %857 = vmatprep.mubr.f32.mxu0 0.0
        %858 = vmatmul.mubr.f32.gmra.mxu0 %v789
        %v859 = vpop.f32.mrf.mxu0
        %v860 = vadd.f32 0.0, %v859
        %v861 = vpop.f32.mrf.mxu0
        %862 = vdwg.mxu0
        %863 = vrot.lane.b32.xlu0 %v627, 104
        %v864 = vpop.permute.xlu0 %863
        %865 = vrot.lane.b32.xlu0 %v611, 104
        %v866 = vpop.permute.xlu0 %865
        %v867 = vsel %vm630, %v864, 0
        %v869 = vsel %vm630, %v866, 0
        %871 = vmatprep.subr.mxu0 0.0
        %872 = vmatpush1.xpose.msra.mxu0 0.0
        %873 = vmatprep.subr.mxu0 0.0
        %874 = vmatpush1.xpose.msra.mxu0 0.0
        %875 = vmatprep.subr.mxu0 0.0
        %876 = vmatpush1.xpose.msra.mxu0 0.0
        %877 = vmatprep.subr.mxu0 0.0
        %878 = vmatpush1.xpose.msra.mxu0 0.0
        %879 = vmatprep.subr.mxu0 0.0
        %880 = vmatpush1.xpose.msra.mxu0 0.0
        %881 = vmatprep.subr.mxu0 0.0
        %882 = vmatpush1.xpose.msra.mxu0 0.0
        %883 = vmatprep.subr.mxu0 0.0
        %884 = vmatpush1.xpose.msra.mxu0 0.0
        %885 = vmatprep.subr.mxu0 0.0
        %886 = vmatpush1.xpose.msra.mxu0 0.0
        %887 = vmatprep.subr.mxu0 0.0
        %888 = vmatpush1.xpose.msra.mxu0 0.0
        %889 = vmatprep.subr.mxu0 0.0
        %890 = vmatpush1.xpose.msra.mxu0 0.0
        %891 = vmatprep.subr.mxu0 0.0
        %892 = vmatpush1.xpose.msra.mxu0 0.0
        %893 = vmatprep.subr.mxu0 0.0
        %894 = vmatpush1.xpose.msra.mxu0 0.0
        %895 = vmatprep.subr.mxu0 0.0
        %896 = vmatpush1.xpose.msra.mxu0 0.0
        %897 = vmatprep.subr.mxu0 0.0
        %898 = vmatpush1.xpose.msra.mxu0 0.0
        %899 = vmatprep.subr.mxu0 0.0
        %900 = vmatpush1.xpose.msra.mxu0 0.0
        %901 = vmatprep.subr.mxu0 0.0
        %902 = vmatpush1.xpose.msra.mxu0 %v869
        %903 = vmatprep.subr.mxu0 0.0
        %904 = vmatpush2.xpose.msra.mxu0 0.0
        %905 = vmatprep.subr.mxu0 0.0
        %906 = vmatpush2.xpose.msra.mxu0 0.0
        %907 = vmatprep.subr.mxu0 0.0
        %908 = vmatpush2.xpose.msra.mxu0 0.0
        %909 = vmatprep.subr.mxu0 0.0
        %910 = vmatpush2.xpose.msra.mxu0 0.0
        %911 = vmatprep.subr.mxu0 0.0
        %912 = vmatpush2.xpose.msra.mxu0 0.0
        %913 = vmatprep.subr.mxu0 0.0
        %914 = vmatpush2.xpose.msra.mxu0 0.0
        %915 = vmatprep.subr.mxu0 0.0
        %916 = vmatpush2.xpose.msra.mxu0 0.0
        %917 = vmatprep.subr.mxu0 0.0
        %918 = vmatpush2.xpose.msra.mxu0 0.0
        %919 = vmatprep.subr.mxu0 0.0
        %920 = vmatpush2.xpose.msra.mxu0 0.0
        %921 = vmatprep.subr.mxu0 0.0
        %922 = vmatpush2.xpose.msra.mxu0 0.0
        %923 = vmatprep.subr.mxu0 0.0
        %924 = vmatpush2.xpose.msra.mxu0 0.0
        %925 = vmatprep.subr.mxu0 0.0
        %926 = vmatpush2.xpose.msra.mxu0 0.0
        %927 = vmatprep.subr.mxu0 0.0
        %928 = vmatpush2.xpose.msra.mxu0 0.0
        %929 = vmatprep.subr.mxu0 0.0
        %930 = vmatpush2.xpose.msra.mxu0 0.0
        %931 = vmatprep.subr.mxu0 0.0
        %932 = vmatpush2.xpose.msra.mxu0 0.0
        %933 = vmatprep.subr.mxu0 0.0
        %934 = vmatpush2.xpose.msra.mxu0 0.0
        %935 = vmatprep.mubr.f32.mxu0 0.0
        %936 = vmatmul.mubr.f32.gmra.mxu0 %v867
        %v937 = vpop.f32.mrf.mxu0
        %v938 = vadd.f32 0.0, %v937
        %v939 = vpop.f32.mrf.mxu0
        %940 = vdwg.mxu0
        %v941 = vlaneseq
        %v942 = vshrl.u32 %v941, 7
        %v943 = vadd.s32 %v942, 8
        %v944 = vadd.s32 %v942, 16
        %v945 = vadd.s32 %v942, 24
        %vm946 = vcmp.lt.s32.totalorder %v942, 0
        %v947 = vsub.s32 0, %v942
        %v948 = vsel %vm946, %v947, %v942
        %v949 = vshrl.u32 %v948, 3
        %v950 = vand.u32 %v948, 7
        %v951 = vsub.s32 0, %v950
        %v952 = vsel %vm946, %v951, %v950
        %vm953 = vcmp.lt.s32.totalorder %v943, 0
        %v954 = vsub.s32 0, %v943
        %v955 = vsel %vm953, %v954, %v943
        %v956 = vshrl.u32 %v955, 3
        %v957 = vand.u32 %v955, 7
        %v958 = vsub.s32 0, %v957
        %v959 = vsel %vm953, %v958, %v957
        %vm960 = vcmp.lt.s32.totalorder %v944, 0
        %v961 = vsub.s32 0, %v944
        %v962 = vsel %vm960, %v961, %v944
        %v963 = vshrl.u32 %v962, 3
        %v964 = vand.u32 %v962, 7
        %v965 = vsub.s32 0, %v964
        %v966 = vsel %vm960, %v965, %v964
        %vm967 = vcmp.lt.s32.totalorder %v945, 0
        %v968 = vsub.s32 0, %v945
        %v969 = vsel %vm967, %v968, %v945
        %v970 = vshrl.u32 %v969, 3
        %v971 = vand.u32 %v969, 7
        %v972 = vsub.s32 0, %v971
        %v973 = vsel %vm967, %v972, %v971
        %vm974 = vcmp.ne.s32.totalorder %v952, 0
        %vm975 = vcmp.ne.s32.totalorder %v959, 0
        %vm976 = vcmp.ne.s32.totalorder %v966, 0
        %vm977 = vcmp.ne.s32.totalorder %v973, 0
        %vm978 = vcmp.lt.s32.totalorder %v952, 0
        %vm979 = vcmp.lt.s32.totalorder %v959, 0
        %vm980 = vcmp.lt.s32.totalorder %v966, 0
        %vm981 = vcmp.lt.s32.totalorder %v973, 0
        %vm982 = vmand %vm978, %vm974
        %vm983 = vmand %vm979, %vm975
        %vm984 = vmand %vm980, %vm976
        %vm985 = vmand %vm981, %vm977
        %v986 = vadd.s32 %v952, 8
        %v987 = vadd.s32 %v959, 8
        %v988 = vadd.s32 %v966, 8
        %v989 = vadd.s32 %v973, 8
        %v990 = vsel %vm982, %v986, %v952
        %v991 = vsel %vm983, %v987, %v959
        %v992 = vsel %vm984, %v988, %v966
        %v993 = vsel %vm985, %v989, %v973
        %v994 = vadd.s32 %v990, 1
        %v995 = vadd.s32 %v991, 1
        %v996 = vadd.s32 %v992, 1
        %v997 = vadd.s32 %v993, 1
        %vm998 = vcmp.lt.s32.totalorder %v994, 0
        %v999 = vsub.s32 0, %v994
        %v1000 = vsel %vm998, %v999, %v994
        %v1001 = vshrl.u32 %v1000, 3
        %v1002 = vand.u32 %v1000, 7
        %v1003 = vsub.s32 0, %v1002
        %v1004 = vsel %vm998, %v1003, %v1002
        %vm1005 = vcmp.lt.s32.totalorder %v995, 0
        %v1006 = vsub.s32 0, %v995
        %v1007 = vsel %vm1005, %v1006, %v995
        %v1008 = vshrl.u32 %v1007, 3
        %v1009 = vand.u32 %v1007, 7
        %v1010 = vsub.s32 0, %v1009
        %v1011 = vsel %vm1005, %v1010, %v1009
        %vm1012 = vcmp.lt.s32.totalorder %v996, 0
        %v1013 = vsub.s32 0, %v996
        %v1014 = vsel %vm1012, %v1013, %v996
        %v1015 = vshrl.u32 %v1014, 3
        %v1016 = vand.u32 %v1014, 7
        %v1017 = vsub.s32 0, %v1016
        %v1018 = vsel %vm1012, %v1017, %v1016
        %vm1019 = vcmp.lt.s32.totalorder %v997, 0
        %v1020 = vsub.s32 0, %v997
        %v1021 = vsel %vm1019, %v1020, %v997
        %v1022 = vshrl.u32 %v1021, 3
        %v1023 = vand.u32 %v1021, 7
        %v1024 = vsub.s32 0, %v1023
        %v1025 = vsel %vm1019, %v1024, %v1023
        %vm1026 = vcmp.ne.s32.totalorder %v1004, 0
        %vm1027 = vcmp.ne.s32.totalorder %v1011, 0
        %vm1028 = vcmp.ne.s32.totalorder %v1018, 0
        %vm1029 = vcmp.ne.s32.totalorder %v1025, 0
        %vm1030 = vcmp.lt.s32.totalorder %v1004, 0
        %vm1031 = vcmp.lt.s32.totalorder %v1011, 0
        %vm1032 = vcmp.lt.s32.totalorder %v1018, 0
        %vm1033 = vcmp.lt.s32.totalorder %v1025, 0
        %vm1034 = vmand %vm1030, %vm1026
        %vm1035 = vmand %vm1031, %vm1027
        %vm1036 = vmand %vm1032, %vm1028
        %vm1037 = vmand %vm1033, %vm1029
        %v1038 = vadd.s32 %v1004, 8
        %v1039 = vadd.s32 %v1011, 8
        %v1040 = vadd.s32 %v1018, 8
        %v1041 = vadd.s32 %v1025, 8
        %v1042 = vsel %vm1034, %v1038, %v1004
        %v1043 = vsel %vm1035, %v1039, %v1011
        %v1044 = vsel %vm1036, %v1040, %v1018
        %v1045 = vsel %vm1037, %v1041, %v1025
        %1050 = vrot.lane.b32.xlu0 %v704, 121
        %v1051 = vpop.permute.xlu0 %1050
        %1052 = vrot.lane.b32.xlu0 %v782, 121
        %v1053 = vpop.permute.xlu0 %1052
        %1054 = vrot.lane.b32.xlu0 %v860, 121
        %v1055 = vpop.permute.xlu0 %1054
        %1056 = vrot.lane.b32.xlu0 %v938, 121
        %v1057 = vpop.permute.xlu0 %1056
        %1062 = vrot.lane.b32.xlu0 %v704, 1
        %v1063 = vpop.permute.xlu0 %1062
        %1064 = vrot.lane.b32.xlu0 %v782, 1
        %v1065 = vpop.permute.xlu0 %1064
        %1066 = vrot.lane.b32.xlu0 %v860, 1
        %v1067 = vpop.permute.xlu0 %1066
        %1068 = vrot.lane.b32.xlu0 %v938, 1
        %v1069 = vpop.permute.xlu0 %1068
        %vm1074 = vcmask 7168
        %v1075 = vsel %vm1074, %v1051, %v1063
        %v1076 = vsel %vm1074, %v1053, %v1065
        %v1077 = vsel %vm1074, %v1055, %v1067
        %v1078 = vsel %vm1074, %v1057, %v1069
        %v1079 = vand.u32 %v1042, 1
        %v1080 = vand.u32 %v1043, 1
        %v1081 = vand.u32 %v1044, 1
        %v1082 = vand.u32 %v1045, 1
        %vm1083 = vcmp.eq.s32.totalorder %v1079, 1
        %vm1084 = vcmp.eq.s32.totalorder %v1080, 1
        %vm1085 = vcmp.eq.s32.totalorder %v1081, 1
        %vm1086 = vcmp.eq.s32.totalorder %v1082, 1
        %v1087 = vsel %vm1083, 1, 0
        %v1088 = vsel %vm1084, 1, 0
        %v1089 = vsel %vm1085, 1, 0
        %v1090 = vsel %vm1086, 1, 0
        %vm1091 = vcmp.eq.s32.totalorder %v1087, 1
        %vm1092 = vcmp.eq.s32.totalorder %v1088, 1
        %vm1093 = vcmp.eq.s32.totalorder %v1089, 1
        %vm1094 = vcmp.eq.s32.totalorder %v1090, 1
        %v1095 = vsel %vm1091, %v1075, %v704
        %v1096 = vsel %vm1092, %v1076, %v782
        %v1097 = vsel %vm1093, %v1077, %v860
        %v1098 = vsel %vm1094, %v1078, %v938
        %1103 = vrot.lane.b32.xlu0 %v1095, 122
        %v1104 = vpop.permute.xlu0 %1103
        %1105 = vrot.lane.b32.xlu0 %v1096, 122
        %v1106 = vpop.permute.xlu0 %1105
        %1107 = vrot.lane.b32.xlu0 %v1097, 122
        %v1108 = vpop.permute.xlu0 %1107
        %1109 = vrot.lane.b32.xlu0 %v1098, 122
        %v1110 = vpop.permute.xlu0 %1109
        %1115 = vrot.lane.b32.xlu0 %v1095, 2
        %v1116 = vpop.permute.xlu0 %1115
        %1117 = vrot.lane.b32.xlu0 %v1096, 2
        %v1118 = vpop.permute.xlu0 %1117
        %1119 = vrot.lane.b32.xlu0 %v1097, 2
        %v1120 = vpop.permute.xlu0 %1119
        %1121 = vrot.lane.b32.xlu0 %v1098, 2
        %v1122 = vpop.permute.xlu0 %1121
        %vm1127 = vcmask 15360
        %v1128 = vsel %vm1127, %v1104, %v1116
        %v1129 = vsel %vm1127, %v1106, %v1118
        %v1130 = vsel %vm1127, %v1108, %v1120
        %v1131 = vsel %vm1127, %v1110, %v1122
        %v1132 = vshra.s32 %v1042, 1
        %v1133 = vshra.s32 %v1043, 1
        %v1134 = vshra.s32 %v1044, 1
        %v1135 = vshra.s32 %v1045, 1
        %v1136 = vand.u32 %v1132, 1
        %v1137 = vand.u32 %v1133, 1
        %v1138 = vand.u32 %v1134, 1
        %v1139 = vand.u32 %v1135, 1
        %vm1140 = vcmp.eq.s32.totalorder %v1136, 1
        %vm1141 = vcmp.eq.s32.totalorder %v1137, 1
        %vm1142 = vcmp.eq.s32.totalorder %v1138, 1
        %vm1143 = vcmp.eq.s32.totalorder %v1139, 1
        %v1144 = vsel %vm1140, 1, 0
        %v1145 = vsel %vm1141, 1, 0
        %v1146 = vsel %vm1142, 1, 0
        %v1147 = vsel %vm1143, 1, 0
        %vm1148 = vcmp.eq.s32.totalorder %v1144, 1
        %vm1149 = vcmp.eq.s32.totalorder %v1145, 1
        %vm1150 = vcmp.eq.s32.totalorder %v1146, 1
        %vm1151 = vcmp.eq.s32.totalorder %v1147, 1
        %v1152 = vsel %vm1148, %v1128, %v1095
        %v1153 = vsel %vm1149, %v1129, %v1096
        %v1154 = vsel %vm1150, %v1130, %v1097
        %v1155 = vsel %vm1151, %v1131, %v1098
        %1160 = vrot.lane.b32.xlu0 %v1152, 124
        %v1161 = vpop.permute.xlu0 %1160
        %1162 = vrot.lane.b32.xlu0 %v1153, 124
        %v1163 = vpop.permute.xlu0 %1162
        %1164 = vrot.lane.b32.xlu0 %v1154, 124
        %v1165 = vpop.permute.xlu0 %1164
        %1166 = vrot.lane.b32.xlu0 %v1155, 124
        %v1167 = vpop.permute.xlu0 %1166
        %1172 = vrot.lane.b32.xlu0 %v1152, 4
        %v1173 = vpop.permute.xlu0 %1172
        %1174 = vrot.lane.b32.xlu0 %v1153, 4
        %v1175 = vpop.permute.xlu0 %1174
        %1176 = vrot.lane.b32.xlu0 %v1154, 4
        %v1177 = vpop.permute.xlu0 %1176
        %1178 = vrot.lane.b32.xlu0 %v1155, 4
        %v1179 = vpop.permute.xlu0 %1178
        %vm1184 = vcmask 31744
        %v1185 = vsel %vm1184, %v1161, %v1173
        %v1186 = vsel %vm1184, %v1163, %v1175
        %v1187 = vsel %vm1184, %v1165, %v1177
        %v1188 = vsel %vm1184, %v1167, %v1179
        %v1189 = vshra.s32 %v1042, 2
        %v1190 = vshra.s32 %v1043, 2
        %v1191 = vshra.s32 %v1044, 2
        %v1192 = vshra.s32 %v1045, 2
        %v1193 = vand.u32 %v1189, 1
        %v1194 = vand.u32 %v1190, 1
        %v1195 = vand.u32 %v1191, 1
        %v1196 = vand.u32 %v1192, 1
        %vm1197 = vcmp.eq.s32.totalorder %v1193, 1
        %vm1198 = vcmp.eq.s32.totalorder %v1194, 1
        %vm1199 = vcmp.eq.s32.totalorder %v1195, 1
        %vm1200 = vcmp.eq.s32.totalorder %v1196, 1
        %v1201 = vsel %vm1197, 1, 0
        %v1202 = vsel %vm1198, 1, 0
        %v1203 = vsel %vm1199, 1, 0
        %v1204 = vsel %vm1200, 1, 0
        %vm1205 = vcmp.eq.s32.totalorder %v1201, 1
        %vm1206 = vcmp.eq.s32.totalorder %v1202, 1
        %vm1207 = vcmp.eq.s32.totalorder %v1203, 1
        %vm1208 = vcmp.eq.s32.totalorder %v1204, 1
        %v1209 = vsel %vm1205, %v1185, %v1152
        %v1210 = vsel %vm1206, %v1186, %v1153
        %v1211 = vsel %vm1207, %v1187, %v1154
        %v1212 = vsel %vm1208, %v1188, %v1155
        %vm1217 = vcmask 1046528
        %v1218 = vrot.slane %v1209, 1
        %v1219 = vrot.slane %v1210, 1
        %v1220 = vsel %vm1217, %v1218, %v1219
        %v1221 = vrot.slane %v1211, 1
        %v1222 = vsel %vm1217, %v1219, %v1221
        %v1223 = vrot.slane %v1212, 1
        %v1224 = vsel %vm1217, %v1221, %v1223
        %v1230 = vsel %vm1217, %v1223, %v1218
        %v1231 = vlaneseq
        %v1232 = vand.u32 %v1231, 127
        %vm1233 = vcmp.le.s32.totalorder %v1232, %v990
        %vm1234 = vcmp.le.s32.totalorder %v1232, %v991
        %vm1235 = vcmp.le.s32.totalorder %v1232, %v992
        %vm1236 = vcmp.le.s32.totalorder %v1232, %v993
        %vm1237 = vcmp.eq.s32.totalorder %v1232, %v994
        %vm1238 = vcmp.eq.s32.totalorder %v1232, %v995
        %vm1239 = vcmp.eq.s32.totalorder %v1232, %v996
        %vm1240 = vcmp.eq.s32.totalorder %v1232, %v997
        %v1241 = vsel %vm1237, 0.0, %v1220
        %v1242 = vsel %vm1238, 0.0, %v1222
        %v1243 = vsel %vm1239, 0.0, %v1224
        %v1244 = vsel %vm1240, 0.0, %v1230
        %v1245 = vsel %vm1233, %v1209, %v1241
        %v1246 = vsel %vm1234, %v1210, %v1242
        %v1247 = vsel %vm1235, %v1211, %v1243
        %v1248 = vsel %vm1236, %v1212, %v1244
        %1250 = vrot.lane.b32.xlu0 %v608, 96
        %v1251 = vpop.permute.xlu0 %1250
        %v1253 = vsel %vm630, %v619, 0
        %v1255 = vsel %vm630, %v1251, 0
        %1257 = vmatprep.subr.mxu0 0.0
        %1258 = vmatpush1.xpose.msra.mxu0 0.0
        %1259 = vmatprep.subr.mxu0 0.0
        %1260 = vmatpush1.xpose.msra.mxu0 0.0
        %1261 = vmatprep.subr.mxu0 0.0
        %1262 = vmatpush1.xpose.msra.mxu0 0.0
        %1263 = vmatprep.subr.mxu0 0.0
        %1264 = vmatpush1.xpose.msra.mxu0 0.0
        %1265 = vmatprep.subr.mxu0 0.0
        %1266 = vmatpush1.xpose.msra.mxu0 0.0
        %1267 = vmatprep.subr.mxu0 0.0
        %1268 = vmatpush1.xpose.msra.mxu0 0.0
        %1269 = vmatprep.subr.mxu0 0.0
        %1270 = vmatpush1.xpose.msra.mxu0 0.0
        %1271 = vmatprep.subr.mxu0 0.0
        %1272 = vmatpush1.xpose.msra.mxu0 0.0
        %1273 = vmatprep.subr.mxu0 0.0
        %1274 = vmatpush1.xpose.msra.mxu0 0.0
        %1275 = vmatprep.subr.mxu0 0.0
        %1276 = vmatpush1.xpose.msra.mxu0 0.0
        %1277 = vmatprep.subr.mxu0 0.0
        %1278 = vmatpush1.xpose.msra.mxu0 0.0
        %1279 = vmatprep.subr.mxu0 0.0
        %1280 = vmatpush1.xpose.msra.mxu0 0.0
        %1281 = vmatprep.subr.mxu0 0.0
        %1282 = vmatpush1.xpose.msra.mxu0 0.0
        %1283 = vmatprep.subr.mxu0 0.0
        %1284 = vmatpush1.xpose.msra.mxu0 0.0
        %1285 = vmatprep.subr.mxu0 0.0
        %1286 = vmatpush1.xpose.msra.mxu0 0.0
        %1287 = vmatprep.subr.mxu0 0.0
        %1288 = vmatpush1.xpose.msra.mxu0 %v1255
        %1289 = vmatprep.subr.mxu0 0.0
        %1290 = vmatpush2.xpose.msra.mxu0 0.0
        %1291 = vmatprep.subr.mxu0 0.0
        %1292 = vmatpush2.xpose.msra.mxu0 0.0
        %1293 = vmatprep.subr.mxu0 0.0
        %1294 = vmatpush2.xpose.msra.mxu0 0.0
        %1295 = vmatprep.subr.mxu0 0.0
        %1296 = vmatpush2.xpose.msra.mxu0 0.0
        %1297 = vmatprep.subr.mxu0 0.0
        %1298 = vmatpush2.xpose.msra.mxu0 0.0
        %1299 = vmatprep.subr.mxu0 0.0
        %1300 = vmatpush2.xpose.msra.mxu0 0.0
        %1301 = vmatprep.subr.mxu0 0.0
        %1302 = vmatpush2.xpose.msra.mxu0 0.0
        %1303 = vmatprep.subr.mxu0 0.0
        %1304 = vmatpush2.xpose.msra.mxu0 0.0
        %1305 = vmatprep.subr.mxu0 0.0
        %1306 = vmatpush2.xpose.msra.mxu0 0.0
        %1307 = vmatprep.subr.mxu0 0.0
        %1308 = vmatpush2.xpose.msra.mxu0 0.0
        %1309 = vmatprep.subr.mxu0 0.0
        %1310 = vmatpush2.xpose.msra.mxu0 0.0
        %1311 = vmatprep.subr.mxu0 0.0
        %1312 = vmatpush2.xpose.msra.mxu0 0.0
        %1313 = vmatprep.subr.mxu0 0.0
        %1314 = vmatpush2.xpose.msra.mxu0 0.0
        %1315 = vmatprep.subr.mxu0 0.0
        %1316 = vmatpush2.xpose.msra.mxu0 0.0
        %1317 = vmatprep.subr.mxu0 0.0
        %1318 = vmatpush2.xpose.msra.mxu0 0.0
        %1319 = vmatprep.subr.mxu0 0.0
        %1320 = vmatpush2.xpose.msra.mxu0 0.0
        %1321 = vmatprep.mubr.f32.mxu0 0.0
        %1322 = vmatmul.mubr.f32.gmra.mxu0 %v1253
        %v1323 = vpop.f32.mrf.mxu0
        %v1324 = vadd.f32 %v1245, %v1323
        %v1325 = vpop.f32.mrf.mxu0
        %1326 = vdwg.mxu0
        %v1327 = vmul.f32 %v1324, 0.17677669
        %v1328 = vsel %vm629, 1, 0
        %v1329 = vlaneseq
        %v1330 = vshrl.u32 %v1329, 7
        %v1331 = vsub.s32 0, %v1330
        %v1332 = vrot.slane %v1328, %v1331
        %vm1333 = vcmp.eq.s32.totalorder %v1332, 1
        %v1334 = vsel %vm1333, -1e+09, %v1327
        %v1335 = vsel %vm630, %v1334, -inf
        %1336 = vmax.xlane.f32.xlu0 %v1335
        %v1337 = vpop.xlane.xlu0 %1336
        %v1338 = vsub.f32 %v1334, %v1337
        %v1339 = vmul.f32 %v1338, 1.442695
        %v1340 = vpow.pop %v1339
        %v1341 = vsel %vm630, %v1340, 0.0
        %1342 = vadd.xlane.f32.xlu0 %v1341
        %v1343 = vpop.xlane.xlu0 %1342
        %v1344 = vrcp.pop %v1343
        %v1345 = vmul.f32 %v1340, %v1344
        %1346 = vrot.lane.b32.xlu0 %v608, 64
        %v1347 = vpop.permute.xlu0 %1346
        %v1350 = vsel %vm630, %v1345, 0
        %1352 = vmatprep.subr.mxu0 0.0
        %1353 = vmatpush1.msra.mxu0 0.0
        %1354 = vmatprep.subr.mxu0 0.0
        %1355 = vmatpush1.msra.mxu0 0.0
        %1356 = vmatprep.subr.mxu0 0.0
        %1357 = vmatpush1.msra.mxu0 0.0
        %1358 = vmatprep.subr.mxu0 0.0
        %1359 = vmatpush1.msra.mxu0 0.0
        %1360 = vmatprep.subr.mxu0 0.0
        %1361 = vmatpush1.msra.mxu0 0.0
        %1362 = vmatprep.subr.mxu0 0.0
        %1363 = vmatpush1.msra.mxu0 0.0
        %1364 = vmatprep.subr.mxu0 0.0
        %1365 = vmatpush1.msra.mxu0 0.0
        %1366 = vmatprep.subr.mxu0 0.0
        %1367 = vmatpush1.msra.mxu0 0.0
        %1368 = vmatprep.subr.mxu0 0.0
        %1369 = vmatpush1.msra.mxu0 0.0
        %1370 = vmatprep.subr.mxu0 0.0
        %1371 = vmatpush1.msra.mxu0 0.0
        %1372 = vmatprep.subr.mxu0 0.0
        %1373 = vmatpush1.msra.mxu0 0.0
        %1374 = vmatprep.subr.mxu0 0.0
        %1375 = vmatpush1.msra.mxu0 0.0
        %1376 = vmatprep.subr.mxu0 0.0
        %1377 = vmatpush1.msra.mxu0 0.0
        %1378 = vmatprep.subr.mxu0 0.0
        %1379 = vmatpush1.msra.mxu0 0.0
        %1380 = vmatprep.subr.mxu0 0.0
        %1381 = vmatpush1.msra.mxu0 0.0
        %1382 = vmatprep.subr.mxu0 0.0
        %1383 = vmatpush1.msra.mxu0 %v1347
        %1384 = vmatprep.subr.mxu0 0.0
        %1385 = vmatpush2.msra.mxu0 0.0
        %1386 = vmatprep.subr.mxu0 0.0
        %1387 = vmatpush2.msra.mxu0 0.0
        %1388 = vmatprep.subr.mxu0 0.0
        %1389 = vmatpush2.msra.mxu0 0.0
        %1390 = vmatprep.subr.mxu0 0.0
        %1391 = vmatpush2.msra.mxu0 0.0
        %1392 = vmatprep.subr.mxu0 0.0
        %1393 = vmatpush2.msra.mxu0 0.0
        %1394 = vmatprep.subr.mxu0 0.0
        %1395 = vmatpush2.msra.mxu0 0.0
        %1396 = vmatprep.subr.mxu0 0.0
        %1397 = vmatpush2.msra.mxu0 0.0
        %1398 = vmatprep.subr.mxu0 0.0
        %1399 = vmatpush2.msra.mxu0 0.0
        %1400 = vmatprep.subr.mxu0 0.0
        %1401 = vmatpush2.msra.mxu0 0.0
        %1402 = vmatprep.subr.mxu0 0.0
        %1403 = vmatpush2.msra.mxu0 0.0
        %1404 = vmatprep.subr.mxu0 0.0
        %1405 = vmatpush2.msra.mxu0 0.0
        %1406 = vmatprep.subr.mxu0 0.0
        %1407 = vmatpush2.msra.mxu0 0.0
        %1408 = vmatprep.subr.mxu0 0.0
        %1409 = vmatpush2.msra.mxu0 0.0
        %1410 = vmatprep.subr.mxu0 0.0
        %1411 = vmatpush2.msra.mxu0 0.0
        %1412 = vmatprep.subr.mxu0 0.0
        %1413 = vmatpush2.msra.mxu0 0.0
        %1414 = vmatprep.subr.mxu0 0.0
        %1415 = vmatpush2.msra.mxu0 0.0
        %1416 = vmatprep.mubr.f32.mxu0 0.0
        %1417 = vmatmul.mubr.f32.gmra.mxu0 %v1350
        %v1418 = vpop.f32.mrf.mxu0
        %v1419 = vadd.f32 0.0, %v1418
        %v1420 = vpop.f32.mrf.mxu0
        %1421 = vdwg.mxu0
        %1422 = vrot.lane.b32.xlu0 %v619, 120
        %v1423 = vpop.permute.xlu0 %1422
        %1424 = vrot.lane.b32.xlu0 %v608, 88
        %v1425 = vpop.permute.xlu0 %1424
        %v1426 = vsel %vm630, %v1423, 0
        %v1428 = vsel %vm630, %v1425, 0
        %1430 = vmatprep.subr.mxu0 0.0
        %1431 = vmatpush1.xpose.msra.mxu0 0.0
        %1432 = vmatprep.subr.mxu0 0.0
        %1433 = vmatpush1.xpose.msra.mxu0 0.0
        %1434 = vmatprep.subr.mxu0 0.0
        %1435 = vmatpush1.xpose.msra.mxu0 0.0
        %1436 = vmatprep.subr.mxu0 0.0
        %1437 = vmatpush1.xpose.msra.mxu0 0.0
        %1438 = vmatprep.subr.mxu0 0.0
        %1439 = vmatpush1.xpose.msra.mxu0 0.0
        %1440 = vmatprep.subr.mxu0 0.0
        %1441 = vmatpush1.xpose.msra.mxu0 0.0
        %1442 = vmatprep.subr.mxu0 0.0
        %1443 = vmatpush1.xpose.msra.mxu0 0.0
        %1444 = vmatprep.subr.mxu0 0.0
        %1445 = vmatpush1.xpose.msra.mxu0 0.0
        %1446 = vmatprep.subr.mxu0 0.0
        %1447 = vmatpush1.xpose.msra.mxu0 0.0
        %1448 = vmatprep.subr.mxu0 0.0
        %1449 = vmatpush1.xpose.msra.mxu0 0.0
        %1450 = vmatprep.subr.mxu0 0.0
        %1451 = vmatpush1.xpose.msra.mxu0 0.0
        %1452 = vmatprep.subr.mxu0 0.0
        %1453 = vmatpush1.xpose.msra.mxu0 0.0
        %1454 = vmatprep.subr.mxu0 0.0
        %1455 = vmatpush1.xpose.msra.mxu0 0.0
        %1456 = vmatprep.subr.mxu0 0.0
        %1457 = vmatpush1.xpose.msra.mxu0 0.0
        %1458 = vmatprep.subr.mxu0 0.0
        %1459 = vmatpush1.xpose.msra.mxu0 0.0
        %1460 = vmatprep.subr.mxu0 0.0
        %1461 = vmatpush1.xpose.msra.mxu0 %v1428
        %1462 = vmatprep.subr.mxu0 0.0
        %1463 = vmatpush2.xpose.msra.mxu0 0.0
        %1464 = vmatprep.subr.mxu0 0.0
        %1465 = vmatpush2.xpose.msra.mxu0 0.0
        %1466 = vmatprep.subr.mxu0 0.0
        %1467 = vmatpush2.xpose.msra.mxu0 0.0
        %1468 = vmatprep.subr.mxu0 0.0
        %1469 = vmatpush2.xpose.msra.mxu0 0.0
        %1470 = vmatprep.subr.mxu0 0.0
        %1471 = vmatpush2.xpose.msra.mxu0 0.0
        %1472 = vmatprep.subr.mxu0 0.0
        %1473 = vmatpush2.xpose.msra.mxu0 0.0
        %1474 = vmatprep.subr.mxu0 0.0
        %1475 = vmatpush2.xpose.msra.mxu0 0.0
        %1476 = vmatprep.subr.mxu0 0.0
        %1477 = vmatpush2.xpose.msra.mxu0 0.0
        %1478 = vmatprep.subr.mxu0 0.0
        %1479 = vmatpush2.xpose.msra.mxu0 0.0
        %1480 = vmatprep.subr.mxu0 0.0
        %1481 = vmatpush2.xpose.msra.mxu0 0.0
        %1482 = vmatprep.subr.mxu0 0.0
        %1483 = vmatpush2.xpose.msra.mxu0 0.0
        %1484 = vmatprep.subr.mxu0 0.0
        %1485 = vmatpush2.xpose.msra.mxu0 0.0
        %1486 = vmatprep.subr.mxu0 0.0
        %1487 = vmatpush2.xpose.msra.mxu0 0.0
        %1488 = vmatprep.subr.mxu0 0.0
        %1489 = vmatpush2.xpose.msra.mxu0 0.0
        %1490 = vmatprep.subr.mxu0 0.0
        %1491 = vmatpush2.xpose.msra.mxu0 0.0
        %1492 = vmatprep.subr.mxu0 0.0
        %1493 = vmatpush2.xpose.msra.mxu0 0.0
        %1494 = vmatprep.mubr.f32.mxu0 0.0
        %1495 = vmatmul.mubr.f32.gmra.mxu0 %v1426
        %v1496 = vpop.f32.mrf.mxu0
        %v1497 = vadd.f32 %v1246, %v1496
        %v1498 = vpop.f32.mrf.mxu0
        %1499 = vdwg.mxu0
        %v1500 = vmul.f32 %v1497, 0.17677669
        %v1501 = vsel %vm1333, -1e+09, %v1500
        %v1502 = vsel %vm630, %v1501, -inf
        %1503 = vmax.xlane.f32.xlu0 %v1502
        %v1504 = vpop.xlane.xlu0 %1503
        %v1505 = vsub.f32 %v1501, %v1504
        %v1506 = vmul.f32 %v1505, 1.442695
        %v1507 = vpow.pop %v1506
        %v1508 = vsel %vm630, %v1507, 0.0
        %1509 = vadd.xlane.f32.xlu0 %v1508
        %v1510 = vpop.xlane.xlu0 %1509
        %v1511 = vrcp.pop %v1510
        %v1512 = vmul.f32 %v1507, %v1511
        %1513 = vrot.lane.b32.xlu0 %v608, 56
        %v1514 = vpop.permute.xlu0 %1513
        %v1517 = vsel %vm630, %v1512, 0
        %1519 = vmatprep.subr.mxu0 0.0
        %1520 = vmatpush1.msra.mxu0 0.0
        %1521 = vmatprep.subr.mxu0 0.0
        %1522 = vmatpush1.msra.mxu0 0.0
        %1523 = vmatprep.subr.mxu0 0.0
        %1524 = vmatpush1.msra.mxu0 0.0
        %1525 = vmatprep.subr.mxu0 0.0
        %1526 = vmatpush1.msra.mxu0 0.0
        %1527 = vmatprep.subr.mxu0 0.0
        %1528 = vmatpush1.msra.mxu0 0.0
        %1529 = vmatprep.subr.mxu0 0.0
        %1530 = vmatpush1.msra.mxu0 0.0
        %1531 = vmatprep.subr.mxu0 0.0
        %1532 = vmatpush1.msra.mxu0 0.0
        %1533 = vmatprep.subr.mxu0 0.0
        %1534 = vmatpush1.msra.mxu0 0.0
        %1535 = vmatprep.subr.mxu0 0.0
        %1536 = vmatpush1.msra.mxu0 0.0
        %1537 = vmatprep.subr.mxu0 0.0
        %1538 = vmatpush1.msra.mxu0 0.0
        %1539 = vmatprep.subr.mxu0 0.0
        %1540 = vmatpush1.msra.mxu0 0.0
        %1541 = vmatprep.subr.mxu0 0.0
        %1542 = vmatpush1.msra.mxu0 0.0
        %1543 = vmatprep.subr.mxu0 0.0
        %1544 = vmatpush1.msra.mxu0 0.0
        %1545 = vmatprep.subr.mxu0 0.0
        %1546 = vmatpush1.msra.mxu0 0.0
        %1547 = vmatprep.subr.mxu0 0.0
        %1548 = vmatpush1.msra.mxu0 0.0
        %1549 = vmatprep.subr.mxu0 0.0
        %1550 = vmatpush1.msra.mxu0 %v1514
        %1551 = vmatprep.subr.mxu0 0.0
        %1552 = vmatpush2.msra.mxu0 0.0
        %1553 = vmatprep.subr.mxu0 0.0
        %1554 = vmatpush2.msra.mxu0 0.0
        %1555 = vmatprep.subr.mxu0 0.0
        %1556 = vmatpush2.msra.mxu0 0.0
        %1557 = vmatprep.subr.mxu0 0.0
        %1558 = vmatpush2.msra.mxu0 0.0
        %1559 = vmatprep.subr.mxu0 0.0
        %1560 = vmatpush2.msra.mxu0 0.0
        %1561 = vmatprep.subr.mxu0 0.0
        %1562 = vmatpush2.msra.mxu0 0.0
        %1563 = vmatprep.subr.mxu0 0.0
        %1564 = vmatpush2.msra.mxu0 0.0
        %1565 = vmatprep.subr.mxu0 0.0
        %1566 = vmatpush2.msra.mxu0 0.0
        %1567 = vmatprep.subr.mxu0 0.0
        %1568 = vmatpush2.msra.mxu0 0.0
        %1569 = vmatprep.subr.mxu0 0.0
        %1570 = vmatpush2.msra.mxu0 0.0
        %1571 = vmatprep.subr.mxu0 0.0
        %1572 = vmatpush2.msra.mxu0 0.0
        %1573 = vmatprep.subr.mxu0 0.0
        %1574 = vmatpush2.msra.mxu0 0.0
        %1575 = vmatprep.subr.mxu0 0.0
        %1576 = vmatpush2.msra.mxu0 0.0
        %1577 = vmatprep.subr.mxu0 0.0
        %1578 = vmatpush2.msra.mxu0 0.0
        %1579 = vmatprep.subr.mxu0 0.0
        %1580 = vmatpush2.msra.mxu0 0.0
        %1581 = vmatprep.subr.mxu0 0.0
        %1582 = vmatpush2.msra.mxu0 0.0
        %1583 = vmatprep.mubr.f32.mxu0 0.0
        %1584 = vmatmul.mubr.f32.gmra.mxu0 %v1517
        %v1585 = vpop.f32.mrf.mxu0
        %v1586 = vadd.f32 0.0, %v1585
        %v1587 = vpop.f32.mrf.mxu0
        %1588 = vdwg.mxu0
        %1589 = vrot.lane.b32.xlu0 %v619, 112
        %v1590 = vpop.permute.xlu0 %1589
        %1591 = vrot.lane.b32.xlu0 %v608, 80
        %v1592 = vpop.permute.xlu0 %1591
        %v1593 = vsel %vm630, %v1590, 0
        %v1595 = vsel %vm630, %v1592, 0
        %1597 = vmatprep.subr.mxu0 0.0
        %1598 = vmatpush1.xpose.msra.mxu0 0.0
        %1599 = vmatprep.subr.mxu0 0.0
        %1600 = vmatpush1.xpose.msra.mxu0 0.0
        %1601 = vmatprep.subr.mxu0 0.0
        %1602 = vmatpush1.xpose.msra.mxu0 0.0
        %1603 = vmatprep.subr.mxu0 0.0
        %1604 = vmatpush1.xpose.msra.mxu0 0.0
        %1605 = vmatprep.subr.mxu0 0.0
        %1606 = vmatpush1.xpose.msra.mxu0 0.0
        %1607 = vmatprep.subr.mxu0 0.0
        %1608 = vmatpush1.xpose.msra.mxu0 0.0
        %1609 = vmatprep.subr.mxu0 0.0
        %1610 = vmatpush1.xpose.msra.mxu0 0.0
        %1611 = vmatprep.subr.mxu0 0.0
        %1612 = vmatpush1.xpose.msra.mxu0 0.0
        %1613 = vmatprep.subr.mxu0 0.0
        %1614 = vmatpush1.xpose.msra.mxu0 0.0
        %1615 = vmatprep.subr.mxu0 0.0
        %1616 = vmatpush1.xpose.msra.mxu0 0.0
        %1617 = vmatprep.subr.mxu0 0.0
        %1618 = vmatpush1.xpose.msra.mxu0 0.0
        %1619 = vmatprep.subr.mxu0 0.0
        %1620 = vmatpush1.xpose.msra.mxu0 0.0
        %1621 = vmatprep.subr.mxu0 0.0
        %1622 = vmatpush1.xpose.msra.mxu0 0.0
        %1623 = vmatprep.subr.mxu0 0.0
        %1624 = vmatpush1.xpose.msra.mxu0 0.0
        %1625 = vmatprep.subr.mxu0 0.0
        %1626 = vmatpush1.xpose.msra.mxu0 0.0
        %1627 = vmatprep.subr.mxu0 0.0
        %1628 = vmatpush1.xpose.msra.mxu0 %v1595
        %1629 = vmatprep.subr.mxu0 0.0
        %1630 = vmatpush2.xpose.msra.mxu0 0.0
        %1631 = vmatprep.subr.mxu0 0.0
        %1632 = vmatpush2.xpose.msra.mxu0 0.0
        %1633 = vmatprep.subr.mxu0 0.0
        %1634 = vmatpush2.xpose.msra.mxu0 0.0
        %1635 = vmatprep.subr.mxu0 0.0
        %1636 = vmatpush2.xpose.msra.mxu0 0.0
        %1637 = vmatprep.subr.mxu0 0.0
        %1638 = vmatpush2.xpose.msra.mxu0 0.0
        %1639 = vmatprep.subr.mxu0 0.0
        %1640 = vmatpush2.xpose.msra.mxu0 0.0
        %1641 = vmatprep.subr.mxu0 0.0
        %1642 = vmatpush2.xpose.msra.mxu0 0.0
        %1643 = vmatprep.subr.mxu0 0.0
        %1644 = vmatpush2.xpose.msra.mxu0 0.0
        %1645 = vmatprep.subr.mxu0 0.0
        %1646 = vmatpush2.xpose.msra.mxu0 0.0
        %1647 = vmatprep.subr.mxu0 0.0
        %1648 = vmatpush2.xpose.msra.mxu0 0.0
        %1649 = vmatprep.subr.mxu0 0.0
        %1650 = vmatpush2.xpose.msra.mxu0 0.0
        %1651 = vmatprep.subr.mxu0 0.0
        %1652 = vmatpush2.xpose.msra.mxu0 0.0
        %1653 = vmatprep.subr.mxu0 0.0
        %1654 = vmatpush2.xpose.msra.mxu0 0.0
        %1655 = vmatprep.subr.mxu0 0.0
        %1656 = vmatpush2.xpose.msra.mxu0 0.0
        %1657 = vmatprep.subr.mxu0 0.0
        %1658 = vmatpush2.xpose.msra.mxu0 0.0
        %1659 = vmatprep.subr.mxu0 0.0
        %1660 = vmatpush2.xpose.msra.mxu0 0.0
        %1661 = vmatprep.mubr.f32.mxu0 0.0
        %1662 = vmatmul.mubr.f32.gmra.mxu0 %v1593
        %v1663 = vpop.f32.mrf.mxu0
        %v1664 = vadd.f32 %v1247, %v1663
        %v1665 = vpop.f32.mrf.mxu0
        %1666 = vdwg.mxu0
        %v1667 = vmul.f32 %v1664, 0.17677669
        %v1668 = vsel %vm1333, -1e+09, %v1667
        %v1669 = vsel %vm630, %v1668, -inf
        %1670 = vmax.xlane.f32.xlu0 %v1669
        %v1671 = vpop.xlane.xlu0 %1670
        %v1672 = vsub.f32 %v1668, %v1671
        %v1673 = vmul.f32 %v1672, 1.442695
        %v1674 = vpow.pop %v1673
        %v1675 = vsel %vm630, %v1674, 0.0
        %1676 = vadd.xlane.f32.xlu0 %v1675
        %v1677 = vpop.xlane.xlu0 %1676
        %v1678 = vrcp.pop %v1677
        %v1679 = vmul.f32 %v1674, %v1678
        %1680 = vrot.lane.b32.xlu0 %v608, 48
        %v1681 = vpop.permute.xlu0 %1680
        %v1684 = vsel %vm630, %v1679, 0
        %1686 = vmatprep.subr.mxu0 0.0
        %1687 = vmatpush1.msra.mxu0 0.0
        %1688 = vmatprep.subr.mxu0 0.0
        %1689 = vmatpush1.msra.mxu0 0.0
        %1690 = vmatprep.subr.mxu0 0.0
        %1691 = vmatpush1.msra.mxu0 0.0
        %1692 = vmatprep.subr.mxu0 0.0
        %1693 = vmatpush1.msra.mxu0 0.0
        %1694 = vmatprep.subr.mxu0 0.0
        %1695 = vmatpush1.msra.mxu0 0.0
        %1696 = vmatprep.subr.mxu0 0.0
        %1697 = vmatpush1.msra.mxu0 0.0
        %1698 = vmatprep.subr.mxu0 0.0
        %1699 = vmatpush1.msra.mxu0 0.0
        %1700 = vmatprep.subr.mxu0 0.0
        %1701 = vmatpush1.msra.mxu0 0.0
        %1702 = vmatprep.subr.mxu0 0.0
        %1703 = vmatpush1.msra.mxu0 0.0
        %1704 = vmatprep.subr.mxu0 0.0
        %1705 = vmatpush1.msra.mxu0 0.0
        %1706 = vmatprep.subr.mxu0 0.0
        %1707 = vmatpush1.msra.mxu0 0.0
        %1708 = vmatprep.subr.mxu0 0.0
        %1709 = vmatpush1.msra.mxu0 0.0
        %1710 = vmatprep.subr.mxu0 0.0
        %1711 = vmatpush1.msra.mxu0 0.0
        %1712 = vmatprep.subr.mxu0 0.0
        %1713 = vmatpush1.msra.mxu0 0.0
        %1714 = vmatprep.subr.mxu0 0.0
        %1715 = vmatpush1.msra.mxu0 0.0
        %1716 = vmatprep.subr.mxu0 0.0
        %1717 = vmatpush1.msra.mxu0 %v1681
        %1718 = vmatprep.subr.mxu0 0.0
        %1719 = vmatpush2.msra.mxu0 0.0
        %1720 = vmatprep.subr.mxu0 0.0
        %1721 = vmatpush2.msra.mxu0 0.0
        %1722 = vmatprep.subr.mxu0 0.0
        %1723 = vmatpush2.msra.mxu0 0.0
        %1724 = vmatprep.subr.mxu0 0.0
        %1725 = vmatpush2.msra.mxu0 0.0
        %1726 = vmatprep.subr.mxu0 0.0
        %1727 = vmatpush2.msra.mxu0 0.0
        %1728 = vmatprep.subr.mxu0 0.0
        %1729 = vmatpush2.msra.mxu0 0.0
        %1730 = vmatprep.subr.mxu0 0.0
        %1731 = vmatpush2.msra.mxu0 0.0
        %1732 = vmatprep.subr.mxu0 0.0
        %1733 = vmatpush2.msra.mxu0 0.0
        %1734 = vmatprep.subr.mxu0 0.0
        %1735 = vmatpush2.msra.mxu0 0.0
        %1736 = vmatprep.subr.mxu0 0.0
        %1737 = vmatpush2.msra.mxu0 0.0
        %1738 = vmatprep.subr.mxu0 0.0
        %1739 = vmatpush2.msra.mxu0 0.0
        %1740 = vmatprep.subr.mxu0 0.0
        %1741 = vmatpush2.msra.mxu0 0.0
        %1742 = vmatprep.subr.mxu0 0.0
        %1743 = vmatpush2.msra.mxu0 0.0
        %1744 = vmatprep.subr.mxu0 0.0
        %1745 = vmatpush2.msra.mxu0 0.0
        %1746 = vmatprep.subr.mxu0 0.0
        %1747 = vmatpush2.msra.mxu0 0.0
        %1748 = vmatprep.subr.mxu0 0.0
        %1749 = vmatpush2.msra.mxu0 0.0
        %1750 = vmatprep.mubr.f32.mxu0 0.0
        %1751 = vmatmul.mubr.f32.gmra.mxu0 %v1684
        %v1752 = vpop.f32.mrf.mxu0
        %v1753 = vadd.f32 0.0, %v1752
        %v1754 = vpop.f32.mrf.mxu0
        %1755 = vdwg.mxu0
        %1756 = vrot.lane.b32.xlu0 %v619, 104
        %v1757 = vpop.permute.xlu0 %1756
        %1758 = vrot.lane.b32.xlu0 %v608, 72
        %v1759 = vpop.permute.xlu0 %1758
        %v1760 = vsel %vm630, %v1757, 0
        %v1762 = vsel %vm630, %v1759, 0
        %1764 = vmatprep.subr.mxu0 0.0
        %1765 = vmatpush1.xpose.msra.mxu0 0.0
        %1766 = vmatprep.subr.mxu0 0.0
        %1767 = vmatpush1.xpose.msra.mxu0 0.0
        %1768 = vmatprep.subr.mxu0 0.0
        %1769 = vmatpush1.xpose.msra.mxu0 0.0
        %1770 = vmatprep.subr.mxu0 0.0
        %1771 = vmatpush1.xpose.msra.mxu0 0.0
        %1772 = vmatprep.subr.mxu0 0.0
        %1773 = vmatpush1.xpose.msra.mxu0 0.0
        %1774 = vmatprep.subr.mxu0 0.0
        %1775 = vmatpush1.xpose.msra.mxu0 0.0
        %1776 = vmatprep.subr.mxu0 0.0
        %1777 = vmatpush1.xpose.msra.mxu0 0.0
        %1778 = vmatprep.subr.mxu0 0.0
        %1779 = vmatpush1.xpose.msra.mxu0 0.0
        %1780 = vmatprep.subr.mxu0 0.0
        %1781 = vmatpush1.xpose.msra.mxu0 0.0
        %1782 = vmatprep.subr.mxu0 0.0
        %1783 = vmatpush1.xpose.msra.mxu0 0.0
        %1784 = vmatprep.subr.mxu0 0.0
        %1785 = vmatpush1.xpose.msra.mxu0 0.0
        %1786 = vmatprep.subr.mxu0 0.0
        %1787 = vmatpush1.xpose.msra.mxu0 0.0
        %1788 = vmatprep.subr.mxu0 0.0
        %1789 = vmatpush1.xpose.msra.mxu0 0.0
        %1790 = vmatprep.subr.mxu0 0.0
        %1791 = vmatpush1.xpose.msra.mxu0 0.0
        %1792 = vmatprep.subr.mxu0 0.0
        %1793 = vmatpush1.xpose.msra.mxu0 0.0
        %1794 = vmatprep.subr.mxu0 0.0
        %1795 = vmatpush1.xpose.msra.mxu0 %v1762
        %1796 = vmatprep.subr.mxu0 0.0
        %1797 = vmatpush2.xpose.msra.mxu0 0.0
        %1798 = vmatprep.subr.mxu0 0.0
        %1799 = vmatpush2.xpose.msra.mxu0 0.0
        %1800 = vmatprep.subr.mxu0 0.0
        %1801 = vmatpush2.xpose.msra.mxu0 0.0
        %1802 = vmatprep.subr.mxu0 0.0
        %1803 = vmatpush2.xpose.msra.mxu0 0.0
        %1804 = vmatprep.subr.mxu0 0.0
        %1805 = vmatpush2.xpose.msra.mxu0 0.0
        %1806 = vmatprep.subr.mxu0 0.0
        %1807 = vmatpush2.xpose.msra.mxu0 0.0
        %1808 = vmatprep.subr.mxu0 0.0
        %1809 = vmatpush2.xpose.msra.mxu0 0.0
        %1810 = vmatprep.subr.mxu0 0.0
        %1811 = vmatpush2.xpose.msra.mxu0 0.0
        %1812 = vmatprep.subr.mxu0 0.0
        %1813 = vmatpush2.xpose.msra.mxu0 0.0
        %1814 = vmatprep.subr.mxu0 0.0
        %1815 = vmatpush2.xpose.msra.mxu0 0.0
        %1816 = vmatprep.subr.mxu0 0.0
        %1817 = vmatpush2.xpose.msra.mxu0 0.0
        %1818 = vmatprep.subr.mxu0 0.0
        %1819 = vmatpush2.xpose.msra.mxu0 0.0
        %1820 = vmatprep.subr.mxu0 0.0
        %1821 = vmatpush2.xpose.msra.mxu0 0.0
        %1822 = vmatprep.subr.mxu0 0.0
        %1823 = vmatpush2.xpose.msra.mxu0 0.0
        %1824 = vmatprep.subr.mxu0 0.0
        %1825 = vmatpush2.xpose.msra.mxu0 0.0
        %1826 = vmatprep.subr.mxu0 0.0
        %1827 = vmatpush2.xpose.msra.mxu0 0.0
        %1828 = vmatprep.mubr.f32.mxu0 0.0
        %1829 = vmatmul.mubr.f32.gmra.mxu0 %v1760
        %v1830 = vpop.f32.mrf.mxu0
        %v1831 = vadd.f32 %v1248, %v1830
        %v1832 = vpop.f32.mrf.mxu0
        %1833 = vdwg.mxu0
        %v1834 = vmul.f32 %v1831, 0.17677669
        %v1835 = vsel %vm1333, -1e+09, %v1834
        %v1836 = vsel %vm630, %v1835, -inf
        %1837 = vmax.xlane.f32.xlu0 %v1836
        %v1838 = vpop.xlane.xlu0 %1837
        %v1839 = vsub.f32 %v1835, %v1838
        %v1840 = vmul.f32 %v1839, 1.442695
        %v1841 = vpow.pop %v1840
        %v1842 = vsel %vm630, %v1841, 0.0
        %1843 = vadd.xlane.f32.xlu0 %v1842
        %v1844 = vpop.xlane.xlu0 %1843
        %v1845 = vrcp.pop %v1844
        %v1846 = vmul.f32 %v1841, %v1845
        %1847 = vrot.lane.b32.xlu0 %v608, 40
        %v1848 = vpop.permute.xlu0 %1847
        %v1851 = vsel %vm630, %v1846, 0
        %1853 = vmatprep.subr.mxu0 0.0
        %1854 = vmatpush1.msra.mxu0 0.0
        %1855 = vmatprep.subr.mxu0 0.0
        %1856 = vmatpush1.msra.mxu0 0.0
        %1857 = vmatprep.subr.mxu0 0.0
        %1858 = vmatpush1.msra.mxu0 0.0
        %1859 = vmatprep.subr.mxu0 0.0
        %1860 = vmatpush1.msra.mxu0 0.0
        %1861 = vmatprep.subr.mxu0 0.0
        %1862 = vmatpush1.msra.mxu0 0.0
        %1863 = vmatprep.subr.mxu0 0.0
        %1864 = vmatpush1.msra.mxu0 0.0
        %1865 = vmatprep.subr.mxu0 0.0
        %1866 = vmatpush1.msra.mxu0 0.0
        %1867 = vmatprep.subr.mxu0 0.0
        %1868 = vmatpush1.msra.mxu0 0.0
        %1869 = vmatprep.subr.mxu0 0.0
        %1870 = vmatpush1.msra.mxu0 0.0
        %1871 = vmatprep.subr.mxu0 0.0
        %1872 = vmatpush1.msra.mxu0 0.0
        %1873 = vmatprep.subr.mxu0 0.0
        %1874 = vmatpush1.msra.mxu0 0.0
        %1875 = vmatprep.subr.mxu0 0.0
        %1876 = vmatpush1.msra.mxu0 0.0
        %1877 = vmatprep.subr.mxu0 0.0
        %1878 = vmatpush1.msra.mxu0 0.0
        %1879 = vmatprep.subr.mxu0 0.0
        %1880 = vmatpush1.msra.mxu0 0.0
        %1881 = vmatprep.subr.mxu0 0.0
        %1882 = vmatpush1.msra.mxu0 0.0
        %1883 = vmatprep.subr.mxu0 0.0
        %1884 = vmatpush1.msra.mxu0 %v1848
        %1885 = vmatprep.subr.mxu0 0.0
        %1886 = vmatpush2.msra.mxu0 0.0
        %1887 = vmatprep.subr.mxu0 0.0
        %1888 = vmatpush2.msra.mxu0 0.0
        %1889 = vmatprep.subr.mxu0 0.0
        %1890 = vmatpush2.msra.mxu0 0.0
        %1891 = vmatprep.subr.mxu0 0.0
        %1892 = vmatpush2.msra.mxu0 0.0
        %1893 = vmatprep.subr.mxu0 0.0
        %1894 = vmatpush2.msra.mxu0 0.0
        %1895 = vmatprep.subr.mxu0 0.0
        %1896 = vmatpush2.msra.mxu0 0.0
        %1897 = vmatprep.subr.mxu0 0.0
        %1898 = vmatpush2.msra.mxu0 0.0
        %1899 = vmatprep.subr.mxu0 0.0
        %1900 = vmatpush2.msra.mxu0 0.0
        %1901 = vmatprep.subr.mxu0 0.0
        %1902 = vmatpush2.msra.mxu0 0.0
        %1903 = vmatprep.subr.mxu0 0.0
        %1904 = vmatpush2.msra.mxu0 0.0
        %1905 = vmatprep.subr.mxu0 0.0
        %1906 = vmatpush2.msra.mxu0 0.0
        %1907 = vmatprep.subr.mxu0 0.0
        %1908 = vmatpush2.msra.mxu0 0.0
        %1909 = vmatprep.subr.mxu0 0.0
        %1910 = vmatpush2.msra.mxu0 0.0
        %1911 = vmatprep.subr.mxu0 0.0
        %1912 = vmatpush2.msra.mxu0 0.0
        %1913 = vmatprep.subr.mxu0 0.0
        %1914 = vmatpush2.msra.mxu0 0.0
        %1915 = vmatprep.subr.mxu0 0.0
        %1916 = vmatpush2.msra.mxu0 0.0
        %1917 = vmatprep.mubr.f32.mxu0 0.0
        %1918 = vmatmul.mubr.f32.gmra.mxu0 %v1851
        %v1919 = vpop.f32.mrf.mxu0
        %v1920 = vadd.f32 0.0, %v1919
        %v1921 = vpop.f32.mrf.mxu0
        %1922 = vdwg.mxu0
        %1924 = vrot.lane.b32.xlu0 %v1586, 8
        %v1925 = vpop.permute.xlu0 %1924
        %1928 = vrot.lane.b32.xlu0 %v1753, 16
        %v1929 = vpop.permute.xlu0 %1928
        %1932 = vrot.lane.b32.xlu0 %v1920, 24
        %v1933 = vpop.permute.xlu0 %1932
        %v1935 = vsel %vm630, %v1419, %v1925
        %vm1936 = vcmask 130048
        %v1937 = vsel %vm1936, %v1935, %v1929
        %vm1938 = vcmask 195584
        %v1939 = vsel %vm1938, %v1937, %v1933
        %v1940 = vld [vmem:[#allocation13] sm:$0xff]
        %v1941 = vld [vmem:[#allocation13 + $0x8] sm:$0xff]
        %v1942 = vld [vmem:[#allocation13 + $0x10] sm:$0xff]
        %v1943 = vld [vmem:[#allocation13 + $0x18] sm:$0xff]
        %v1944 = vld [vmem:[%s10] sm:$0x1]
        %v1946 = vlaneseq
        %v1947 = vshrl.u32 %v1946, 7
        %v1948 = vsub.s32 0, %v1947
        %v1949 = vrot.slane %v1944, %v1948
        %v1952 = vsel %vm496, %v1939, 0
        %1954 = vmatprep.subr.mxu0 0.0
        %1955 = vmatpush1.msra.mxu0 0.0
        %1956 = vmatprep.subr.mxu0 0.0
        %1957 = vmatpush1.msra.mxu0 0.0
        %1958 = vmatprep.subr.mxu0 0.0
        %1959 = vmatpush1.msra.mxu0 0.0
        %1960 = vmatprep.subr.mxu0 0.0
        %1961 = vmatpush1.msra.mxu0 0.0
        %1962 = vmatprep.subr.mxu0 0.0
        %1963 = vmatpush1.msra.mxu0 0.0
        %1964 = vmatprep.subr.mxu0 0.0
        %1965 = vmatpush1.msra.mxu0 0.0
        %1966 = vmatprep.subr.mxu0 0.0
        %1967 = vmatpush1.msra.mxu0 0.0
        %1968 = vmatprep.subr.mxu0 0.0
        %1969 = vmatpush1.msra.mxu0 0.0
        %1970 = vmatprep.subr.mxu0 0.0
        %1971 = vmatpush1.msra.mxu0 0.0
        %1972 = vmatprep.subr.mxu0 0.0
        %1973 = vmatpush1.msra.mxu0 0.0
        %1974 = vmatprep.subr.mxu0 0.0
        %1975 = vmatpush1.msra.mxu0 0.0
        %1976 = vmatprep.subr.mxu0 0.0
        %1977 = vmatpush1.msra.mxu0 0.0
        %1978 = vmatprep.subr.mxu0 0.0
        %1979 = vmatpush1.msra.mxu0 %v1943
        %1980 = vmatprep.subr.mxu0 0.0
        %1981 = vmatpush1.msra.mxu0 %v1942
        %1982 = vmatprep.subr.mxu0 0.0
        %1983 = vmatpush1.msra.mxu0 %v1941
        %1984 = vmatprep.subr.mxu0 0.0
        %1985 = vmatpush1.msra.mxu0 %v1940
        %1986 = vmatprep.subr.mxu0 0.0
        %1987 = vmatpush2.msra.mxu0 0.0
        %1988 = vmatprep.subr.mxu0 0.0
        %1989 = vmatpush2.msra.mxu0 0.0
        %1990 = vmatprep.subr.mxu0 0.0
        %1991 = vmatpush2.msra.mxu0 0.0
        %1992 = vmatprep.subr.mxu0 0.0
        %1993 = vmatpush2.msra.mxu0 0.0
        %1994 = vmatprep.subr.mxu0 0.0
        %1995 = vmatpush2.msra.mxu0 0.0
        %1996 = vmatprep.subr.mxu0 0.0
        %1997 = vmatpush2.msra.mxu0 0.0
        %1998 = vmatprep.subr.mxu0 0.0
        %1999 = vmatpush2.msra.mxu0 0.0
        %2000 = vmatprep.subr.mxu0 0.0
        %2001 = vmatpush2.msra.mxu0 0.0
        %2002 = vmatprep.subr.mxu0 0.0
        %2003 = vmatpush2.msra.mxu0 0.0
        %2004 = vmatprep.subr.mxu0 0.0
        %2005 = vmatpush2.msra.mxu0 0.0
        %2006 = vmatprep.subr.mxu0 0.0
        %2007 = vmatpush2.msra.mxu0 0.0
        %2008 = vmatprep.subr.mxu0 0.0
        %2009 = vmatpush2.msra.mxu0 0.0
        %2010 = vmatprep.subr.mxu0 0.0
        %2011 = vmatpush2.msra.mxu0 0.0
        %2012 = vmatprep.subr.mxu0 0.0
        %2013 = vmatpush2.msra.mxu0 0.0
        %2014 = vmatprep.subr.mxu0 0.0
        %2015 = vmatpush2.msra.mxu0 0.0
        %2016 = vmatprep.subr.mxu0 0.0
        %2017 = vmatpush2.msra.mxu0 0.0
        %2018 = vmatprep.mubr.f32.mxu0 0.0
        %2019 = vmatmul.mubr.f32.gmra.mxu0 %v1952
        %v2020 = vpop.f32.mrf.mxu0
        %v2021 = vadd.f32 %v1949, %v2020
        %v2022 = vpop.f32.mrf.mxu0
        %2023 = vdwg.mxu0
        %2024 = vst.msk [vmem:[%s491] sm:$0xff] %vm496, %v2021
        %s2025 = sand.u32 %s280, 1
        %s2026 = scalar_lea.sflag [#allocation4], %s2025
        %s2027 = sand.u32 %s280, 1
        %s2028 = smul.addr %s2027, 8
        %s2029 = scalar_lea.vmem [#allocation14], %s2028
        // Predicated region
        $region93: #{tpu_custom_call.1} parent=63 // pred_check
          %p2030 = pneg %p290
        $region94: #{tpu_custom_call.1} parent=63 // pred_check_branch
          %2032 = sbr.rel (%p2030) target = $region96
        $region95: #{tpu_custom_call.1} parent=63 // pred_region
          %s2034 = ssub.s32 128, 128
          %2035 = vsyncadd %s2026, %s2034
          %s2036 = smul.addr %s31, 128
          %s2037 = scalar_lea.hbm %s11, %s2036
          %s2039 = sshll.u32 %s2029, 4
          %s2040 = int_to_ptr.vmem [resolvable:$true] %s2039
          %2042 = dma.vmem_to_hbm [thread:$0]  %s2040, 128, %s2037, %s2026
        $region96: #{tpu_custom_call.1} parent=63 // pred_fallthru
          _
      $region64: #{tpu_custom_call.1} parent=5 // pred_fallthru
        _
      %p2043 = scmp.le.s32.totalorder 2, %s26
      // Predicated region
      $region97: #{tpu_custom_call.1} parent=5 // pred_check
        %p2044 = pneg %p2043
      $region98: #{tpu_custom_call.1} parent=5 // pred_check_branch
        %2046 = sbr.rel (%p2044) target = $region100
      $region99: #{tpu_custom_call.1} parent=5 // pred_region
        %s2047 = ssub.s32 %s26, 2
        // Predicated region
        $region101: #{tpu_custom_call.1} parent=99 // pred_check
          %p2048 = pneg %p296
        $region102: #{tpu_custom_call.1} parent=99 // pred_check_branch
          %2050 = sbr.rel (%p2048) target = $region104
        $region103: #{tpu_custom_call.1} parent=99 // pred_region
          %s2051 = sand.u32 %s281, 1
          %s2052 = scalar_lea.sflag [#allocation4], %s2051
          %s2053 = sand.u32 %s281, 1
          %s2054 = smul.addr %s2053, 8
          %s2055 = scalar_lea.vmem [#allocation14], %s2054
          %2056 = dma.done %s2052, 128
        $region104: #{tpu_custom_call.1} parent=99 // pred_fallthru
          _
      $region100: #{tpu_custom_call.1} parent=5 // pred_fallthru
        _
    $region6: #{tpu_custom_call.1} parent=1 // loop_footer
      %s30 = sadd.s32 1, %s26
    $region7: #{tpu_custom_call.1} parent=1 // loop_footer_branch
      %25 = sbr.rel target = $region3
    $region8: #{tpu_custom_call.1} parent=1 // loop_exit
      _
    %2057 = vsyncpa [#allocation3], 1
    %s2058 = scalar_lea.sflag [#allocation3], 1
    %2059 = vsyncpa %s2058, 1
    %2060 = vsyncpa [#allocation6], 1
    %2061 = vsyncpa [#allocation9], 1
    %2062 = vsyncpa [#allocation12], 1
    %2063 = vsyncpa [#allocation4], 1
    %s2064 = scalar_lea.sflag [#allocation4], 1
    %2065 = vsyncpa %s2064, 1

</llo_original>
